<compile_context>
chip_gen: v7x
topology: tpu7x:2x2x1
jax: 0.10.0
libtpu: 0.0.40
codegen_flags: <defaults>
</compile_context>

<pallas_src>
import functools

import jax
import jax.numpy as jnp
import numpy as np
from jax.experimental import pallas as pl
from jax.experimental.pallas import tpu as pltpu

N_NODES = 32
N_FEATURES = 16     # dataset_pyg.num_features (synthetic)
N_CLASSES = 7       # dataset_pyg.num_classes (synthetic)
HIDDEN = 8
HEADS = 8
N_EDGES = 64


def _gat_pyg_kernel(x_ref, w1_ref, sel1_ref, rep1_ref, blk_ref, negm_ref,
                    b1_ref, w2_ref, sel2_ref, b2_ref, out_ref,
                    *, negative_slope):
    f32 = jnp.float32
    N = x_ref.shape[0]
    heads = rep1_ref.shape[0]

    # ---------------- layer 1: GATConv(F_in -> 8, heads=8, concat=True) ----------
    xw = jnp.dot(x_ref[...], w1_ref[...], preferred_element_type=f32)         # [N, heads*C]
    # src/dst attention logits for all heads in one MXU pass: [N, 2*heads]
    r = jnp.dot(xw, sel1_ref[...], preferred_element_type=f32)
    a_src = r[:, :heads]                                                       # [N, heads]
    a_dst = r[:, heads:]                                                       # [N, heads]

    # Pack heads into lanes: e[i, h*N + j] = a_dst[i, h] + a_src[j, h]  -> [N, heads*N]
    a_srcT = a_src.T                                                           # [heads, N] (XLU)
    s_row = jnp.concatenate([a_srcT[h:h + 1, :] for h in range(heads)], axis=1)  # [1, heads*N]
    d_all = jnp.dot(a_dst, rep1_ref[...], preferred_element_type=f32)          # [N, heads*N]
    e = d_all + s_row
    e = jnp.where(e > 0, e, negative_slope * e)                                # LeakyReLU(0.2)
    e = e + negm_ref[...]                                                      # additive -1e30 non-edge mask

    # Global per-row max is a valid shift for every head's softmax (numerator and
    # denominator share it; masked entries underflow exp() to exactly 0).
    m = jnp.max(e, axis=1, keepdims=True)                                      # [N, 1]
    p = jnp.exp(e - m)                                                         # [N, heads*N]

    blk = blk_ref[...]                                                         # [heads*N, heads*C] block mask
    # Head-expanded softmax denominators in one matmul: denom[i, h*C+c] = sum_j p[i, h*N+j]
    denom = jnp.dot(p, blk, preferred_element_type=f32)                        # [N, heads*C]
    inv = pl.reciprocal(denom, approx=False)

    # TODO(synk): attention dropout (p=0.6) is training-only; skipped in eval mode.
    # Block-diagonal value matrix built in-register: bd[h*N+j, h*C+c] = xw[j, h*C+c].
    bd = jnp.concatenate([xw] * heads, axis=0) * blk                           # [heads*N, heads*C]
    o1 = jnp.dot(p, bd, preferred_element_type=f32)                            # [N, heads*C], heads already concat
    y1 = o1 * inv + b1_ref[...]                                                # normalize after matmul
    # ELU
    h1 = jnp.where(y1 > 0, y1, jnp.exp(jnp.minimum(y1, 0.0)) - 1.0)

    # ---------------- layer 2: GATConv(64 -> n_classes, heads=1, concat=False) ---
    xw2 = jnp.dot(h1, w2_ref[...], preferred_element_type=f32)                 # [N, C2]
    a2 = jnp.dot(xw2, sel2_ref[...], preferred_element_type=f32)               # [N, 2] (src, dst)
    a2T = a2.T                                                                 # [2, N]
    e2 = a2[:, 1:2] + a2T[0:1, :]                                              # e2[i, j] = a_dst[i] + a_src[j]
    e2 = jnp.where(e2 > 0, e2, negative_slope * e2)
    e2 = e2 + negm_ref[:, :N]                                                  # head-0 block == untiled mask
    m2 = jnp.max(e2, axis=1, keepdims=True)
    p2 = jnp.exp(e2 - m2)                                                      # [N, N]

    n_cls = xw2.shape[1]
    # Fold the denominator into the value matmul by appending a ones column.
    xw2e = jnp.concatenate([xw2, jnp.ones((N, 1), f32)], axis=1)               # [N, C2+1]
    od = jnp.dot(p2, xw2e, preferred_element_type=f32)                         # [N, C2+1]
    o = od[:, :n_cls] * pl.reciprocal(od[:, n_cls:], approx=False)
    o = o + b2_ref[...]                                                        # heads=1 -> mean is identity

    # log_softmax over classes; single store of the final result.
    m3 = jnp.max(o, axis=1, keepdims=True)
    s = o - m3
    lse = jnp.log(jnp.sum(jnp.exp(s), axis=1, keepdims=True))
    out_ref[...] = s - lse


def _block_diag_selector(att, heads, C):
    # att: [heads, C] -> [heads*C, heads] block-diagonal selector so that
    # (xw @ sel)[:, h] = sum_c xw[:, h*C+c] * att[h, c]
    mask = jnp.asarray(np.kron(np.eye(heads, dtype=np.float32),
                               np.ones((C, 1), np.float32)))
    return att.reshape(heads * C, 1).astype(jnp.float32) * mask


def gat_pyg_forward(x, adj, params):
    # F.dropout(p=0.6) -> identity (eval mode)
    N = x.shape[0]
    heads, c1 = HEADS, HIDDEN
    hc = heads * c1
    n_cls = params["w2"].shape[1]

    sel1 = jnp.concatenate(
        [_block_diag_selector(params["att_src1"], heads, c1),
         _block_diag_selector(params["att_dst1"], heads, c1)], axis=1)         # [hc, 2*heads]
    sel2 = jnp.concatenate(
        [params["att_src2"].reshape(n_cls, 1),
         params["att_dst2"].reshape(n_cls, 1)], axis=1).astype(jnp.float32)    # [n_cls, 2]

    # Head replicator (dst logits -> lane-packed slab).
    rep1 = jnp.asarray(np.kron(np.eye(heads, dtype=np.float32),
                               np.ones((1, N), np.float32)))                   # [heads, heads*N]
    # Block mask: blk[h*N+j, h'*C+c] = (h == h'). Serves both as the segment-sum /
    # head-expander for the softmax denominator and as the block-diagonal mask
    # for the fused per-head value matmul.
    blk = jnp.asarray(np.kron(np.eye(heads, dtype=np.float32),
                              np.ones((N, c1), np.float32)))                   # [heads*N, heads*C]

    neg_mask = (adj - 1.0) * 1e30                                              # 0 on edges, -1e30 otherwise
    negm_t = jnp.tile(neg_mask, (1, heads))                                    # [N, heads*N]

    b1 = params["b1"].reshape(1, hc).astype(jnp.float32)
    b2 = params["b2"].reshape(1, n_cls).astype(jnp.float32)

    kernel = functools.partial(_gat_pyg_kernel, negative_slope=0.2)
    return pl.pallas_call(
        kernel,
        out_shape=jax.ShapeDtypeStruct((N, n_cls), jnp.float32),
        in_specs=[pl.BlockSpec(memory_space=pltpu.MemorySpace.VMEM)] * 10,
        out_specs=pl.BlockSpec(memory_space=pltpu.MemorySpace.VMEM),
    )(x, params["w1"], sel1, rep1, blk, negm_t, b1, params["w2"], sel2, b2)


# ------------------------- pure-JAX reference -------------------------
def _gat_layer_ref(x, w, att_src, att_dst, bias, adj, heads, C, concat):
    N = x.shape[0]
    xw = x @ w
    xw3 = xw.reshape(N, heads, C)
    a_src = (xw3 * att_src[None]).sum(-1)          # [N, H]
    a_dst = (xw3 * att_dst[None]).sum(-1)          # [N, H]
    e = a_dst[:, None, :] + a_src[None, :, :]      # [N(dst), N(src), H]
    e = jnp.where(e > 0, e, 0.2 * e)
    mask = adj[:, :, None] > 0
    e = jnp.where(mask, e, -1e30)
    m = e.max(axis=1, keepdims=True)
    p = jnp.where(mask, jnp.exp(e - m), 0.0)
    alpha = p / p.sum(axis=1, keepdims=True)
    out = jnp.einsum('ijh,jhc->ihc', alpha, xw3)
    if concat:
        return out.reshape(N, heads * C) + bias
    return out.mean(axis=1) + bias


def _forward_ref(x, adj, params):
    h1 = _gat_layer_ref(x, params["w1"], params["att_src1"], params["att_dst1"],
                        params["b1"], adj, HEADS, HIDDEN, True)
    h1 = jnp.where(h1 > 0, h1, jnp.exp(jnp.minimum(h1, 0.0)) - 1.0)
    o = _gat_layer_ref(h1, params["w2"], params["att_src2"], params["att_dst2"],
                       params["b2"], adj, 1, N_CLASSES, False)
    return jax.nn.log_softmax(o, axis=-1)


def _glorot(key, shape):
    fan_in, fan_out = shape[-2], shape[-1]
    limit = (6.0 / (fan_in + fan_out)) ** 0.5
    return jax.random.uniform(key, shape, jnp.float32, -limit, limit)


if __name__ == "__main__":
    key = jax.random.PRNGKey(0)
    kx, ke, k1, k2, k3, k4, k5, k6 = jax.random.split(key, 8)

    # Node features and random edge list [2, E] (row 0 = src, row 1 = dst).
    x = jax.random.normal(kx, (N_NODES, N_FEATURES), jnp.float32)
    edge_index = jax.random.randint(ke, (2, N_EDGES), 0, N_NODES, dtype=jnp.int32)

    # Dense adjacency mask: adj[dst, src] = 1, plus self-loops.
    adj = jnp.zeros((N_NODES, N_NODES), jnp.float32)
    adj = adj.at[edge_index[1], edge_index[0]].set(1.0)
    adj = jnp.maximum(adj, jnp.eye(N_NODES, dtype=jnp.float32))

    params = {
        "w1": _glorot(k1, (N_FEATURES, HEADS * HIDDEN)),
        "att_src1": _glorot(k2, (HEADS, HIDDEN)),
        "att_dst1": _glorot(k3, (HEADS, HIDDEN)),
        "b1": jnp.zeros((HEADS * HIDDEN,), jnp.float32),
        "w2": _glorot(k4, (HEADS * HIDDEN, N_CLASSES)),
        "att_src2": _glorot(k5, (1, N_CLASSES)),
        "att_dst2": _glorot(k6, (1, N_CLASSES)),
        "b2": jnp.zeros((N_CLASSES,), jnp.float32),
    }

    out = gat_pyg_forward(x, adj, params)
    out = jax.block_until_ready(out)

    ref = jax.block_until_ready(_forward_ref(x, adj, params))
    np.testing.assert_allclose(np.asarray(out), np.asarray(ref), rtol=1e-4, atol=1e-4)

    print("KERNEL_OK")
</pallas_src>

<mosaic_0001>
module attributes {stable_mosaic.version = 11 : i64} {
  func.func @_gat_pyg_kernel(%arg0: memref<32x16xf32, #tpu.memory_space<vmem>>, %arg1: memref<16x64xf32, #tpu.memory_space<vmem>>, %arg2: memref<64x16xf32, #tpu.memory_space<vmem>>, %arg3: memref<8x256xf32, #tpu.memory_space<vmem>>, %arg4: memref<256x64xf32, #tpu.memory_space<vmem>>, %arg5: memref<32x256xf32, #tpu.memory_space<vmem>>, %arg6: memref<1x64xf32, #tpu.memory_space<vmem>>, %arg7: memref<64x7xf32, #tpu.memory_space<vmem>>, %arg8: memref<7x2xf32, #tpu.memory_space<vmem>>, %arg9: memref<1x7xf32, #tpu.memory_space<vmem>>, %arg10: memref<32x7xf32, #tpu.memory_space<vmem>>) attributes {dimension_semantics = [], scalar_prefetch = 0 : i64, scratch_operands = 0 : i64, tpu.core_type = #tpu.core_type<tc>} {
    %c0 = arith.constant 0 : index
    %c0_0 = arith.constant 0 : index
    %0 = vector.load %arg0[%c0, %c0_0] : memref<32x16xf32, #tpu.memory_space<vmem>>, vector<32x16xf32>
    %c0_1 = arith.constant 0 : index
    %c0_2 = arith.constant 0 : index
    %1 = vector.load %arg1[%c0_1, %c0_2] : memref<16x64xf32, #tpu.memory_space<vmem>>, vector<16x64xf32>
    %cst = arith.constant dense<0.000000e+00> : vector<32x64xf32>
    %2 = tpu.matmul %0, %1, %cst {dimension_numbers = #tpu.dot_dimension_numbers<[1], [0], [0], [1], [0, 0, 1, 1], [], []>} : vector<32x16xf32>, vector<16x64xf32>, vector<32x64xf32> -> vector<32x64xf32>
    %c0_3 = arith.constant 0 : index
    %c0_4 = arith.constant 0 : index
    %3 = vector.load %arg2[%c0_3, %c0_4] : memref<64x16xf32, #tpu.memory_space<vmem>>, vector<64x16xf32>
    %cst_5 = arith.constant dense<0.000000e+00> : vector<32x16xf32>
    %4 = tpu.matmul %2, %3, %cst_5 {dimension_numbers = #tpu.dot_dimension_numbers<[1], [0], [0], [1], [0, 0, 1, 1], [], []>} : vector<32x64xf32>, vector<64x16xf32>, vector<32x16xf32> -> vector<32x16xf32>
    %5 = vector.extract_strided_slice %4 {offsets = [0, 0], sizes = [32, 8], strides = [1, 1]} : vector<32x16xf32> to vector<32x8xf32>
    %6 = vector.extract_strided_slice %4 {offsets = [0, 8], sizes = [32, 8], strides = [1, 1]} : vector<32x16xf32> to vector<32x8xf32>
    %7 = tpu.transpose %5, [1, 0] : vector<32x8xf32> -> vector<8x32xf32>
    %8 = vector.extract_strided_slice %7 {offsets = [0, 0], sizes = [1, 32], strides = [1, 1]} : vector<8x32xf32> to vector<1x32xf32>
    %9 = vector.extract_strided_slice %7 {offsets = [1, 0], sizes = [1, 32], strides = [1, 1]} : vector<8x32xf32> to vector<1x32xf32>
    %10 = vector.extract_strided_slice %7 {offsets = [2, 0], sizes = [1, 32], strides = [1, 1]} : vector<8x32xf32> to vector<1x32xf32>
    %11 = vector.extract_strided_slice %7 {offsets = [3, 0], sizes = [1, 32], strides = [1, 1]} : vector<8x32xf32> to vector<1x32xf32>
    %12 = vector.extract_strided_slice %7 {offsets = [4, 0], sizes = [1, 32], strides = [1, 1]} : vector<8x32xf32> to vector<1x32xf32>
    %13 = vector.extract_strided_slice %7 {offsets = [5, 0], sizes = [1, 32], strides = [1, 1]} : vector<8x32xf32> to vector<1x32xf32>
    %14 = vector.extract_strided_slice %7 {offsets = [6, 0], sizes = [1, 32], strides = [1, 1]} : vector<8x32xf32> to vector<1x32xf32>
    %15 = vector.extract_strided_slice %7 {offsets = [7, 0], sizes = [1, 32], strides = [1, 1]} : vector<8x32xf32> to vector<1x32xf32>
    %16 = tpu.concatenate %8, %9, %10, %11, %12, %13, %14, %15 in 1 : vector<1x32xf32>, vector<1x32xf32>, vector<1x32xf32>, vector<1x32xf32>, vector<1x32xf32>, vector<1x32xf32>, vector<1x32xf32>, vector<1x32xf32> -> vector<1x256xf32>
    %c0_6 = arith.constant 0 : index
    %c0_7 = arith.constant 0 : index
    %17 = vector.load %arg3[%c0_6, %c0_7] : memref<8x256xf32, #tpu.memory_space<vmem>>, vector<8x256xf32>
    %cst_8 = arith.constant dense<0.000000e+00> : vector<32x256xf32>
    %18 = tpu.matmul %6, %17, %cst_8 {dimension_numbers = #tpu.dot_dimension_numbers<[1], [0], [0], [1], [0, 0, 1, 1], [], []>} : vector<32x8xf32>, vector<8x256xf32>, vector<32x256xf32> -> vector<32x256xf32>
    %19 = vector.broadcast %16 : vector<1x256xf32> to vector<32x256xf32>
    %20 = arith.addf %18, %19 : vector<32x256xf32>
    %cst_9 = arith.constant 0.000000e+00 : f32
    %21 = vector.broadcast %cst_9 : f32 to vector<32x256xf32>
    %22 = arith.cmpf ogt, %20, %21 : vector<32x256xf32>
    %cst_10 = arith.constant 2.000000e-01 : f32
    %23 = vector.broadcast %cst_10 : f32 to vector<32x256xf32>
    %24 = arith.mulf %23, %20 : vector<32x256xf32>
    %25 = arith.select %22, %20, %24 : vector<32x256xi1>, vector<32x256xf32>
    %c0_11 = arith.constant 0 : index
    %c0_12 = arith.constant 0 : index
    %26 = vector.load %arg5[%c0_11, %c0_12] : memref<32x256xf32, #tpu.memory_space<vmem>>, vector<32x256xf32>
    %27 = arith.addf %25, %26 : vector<32x256xf32>
    %cst_13 = arith.constant dense<0xFF800000> : vector<32xf32>
    %28 = vector.multi_reduction <maximumf>, %27, %cst_13 [1] : vector<32x256xf32> to vector<32xf32>
    %29 = vector.shape_cast %28 : vector<32xf32> to vector<32x1xf32>
    %30 = vector.broadcast %29 : vector<32x1xf32> to vector<32x256xf32>
    %31 = arith.subf %27, %30 : vector<32x256xf32>
    %32 = math.exp %31 : vector<32x256xf32>
    %c0_14 = arith.constant 0 : index
    %c0_15 = arith.constant 0 : index
    %33 = vector.load %arg4[%c0_14, %c0_15] : memref<256x64xf32, #tpu.memory_space<vmem>>, vector<256x64xf32>
    %cst_16 = arith.constant dense<0.000000e+00> : vector<32x64xf32>
    %34 = tpu.matmul %32, %33, %cst_16 {dimension_numbers = #tpu.dot_dimension_numbers<[1], [0], [0], [1], [0, 0, 1, 1], [], []>} : vector<32x256xf32>, vector<256x64xf32>, vector<32x64xf32> -> vector<32x64xf32>
    %35 = tpu.reciprocal %34 : vector<32x64xf32> -> vector<32x64xf32>
    %36 = tpu.concatenate %2, %2, %2, %2, %2, %2, %2, %2 in 0 : vector<32x64xf32>, vector<32x64xf32>, vector<32x64xf32>, vector<32x64xf32>, vector<32x64xf32>, vector<32x64xf32>, vector<32x64xf32>, vector<32x64xf32> -> vector<256x64xf32>
    %37 = arith.mulf %36, %33 : vector<256x64xf32>
    %cst_17 = arith.constant dense<0.000000e+00> : vector<32x64xf32>
    %38 = tpu.matmul %32, %37, %cst_17 {dimension_numbers = #tpu.dot_dimension_numbers<[1], [0], [0], [1], [0, 0, 1, 1], [], []>} : vector<32x256xf32>, vector<256x64xf32>, vector<32x64xf32> -> vector<32x64xf32>
    %39 = arith.mulf %38, %35 : vector<32x64xf32>
    %c0_18 = arith.constant 0 : index
    %c0_19 = arith.constant 0 : index
    %40 = vector.load %arg6[%c0_18, %c0_19] : memref<1x64xf32, #tpu.memory_space<vmem>>, vector<1x64xf32>
    %41 = vector.broadcast %40 : vector<1x64xf32> to vector<32x64xf32>
    %42 = arith.addf %39, %41 : vector<32x64xf32>
    %cst_20 = arith.constant 0.000000e+00 : f32
    %43 = vector.broadcast %cst_20 : f32 to vector<32x64xf32>
    %44 = arith.cmpf ogt, %42, %43 : vector<32x64xf32>
    %cst_21 = arith.constant 0.000000e+00 : f32
    %45 = vector.broadcast %cst_21 : f32 to vector<32x64xf32>
    %46 = arith.minimumf %42, %45 : vector<32x64xf32>
    %47 = math.exp %46 : vector<32x64xf32>
    %cst_22 = arith.constant 1.000000e+00 : f32
    %48 = vector.broadcast %cst_22 : f32 to vector<32x64xf32>
    %49 = arith.subf %47, %48 : vector<32x64xf32>
    %50 = arith.select %44, %42, %49 : vector<32x64xi1>, vector<32x64xf32>
    %c0_23 = arith.constant 0 : index
    %c0_24 = arith.constant 0 : index
    %51 = vector.load %arg7[%c0_23, %c0_24] : memref<64x7xf32, #tpu.memory_space<vmem>>, vector<64x7xf32>
    %cst_25 = arith.constant dense<0.000000e+00> : vector<32x7xf32>
    %52 = tpu.matmul %50, %51, %cst_25 {dimension_numbers = #tpu.dot_dimension_numbers<[1], [0], [0], [1], [0, 0, 1, 1], [], []>} : vector<32x64xf32>, vector<64x7xf32>, vector<32x7xf32> -> vector<32x7xf32>
    %c0_26 = arith.constant 0 : index
    %c0_27 = arith.constant 0 : index
    %53 = vector.load %arg8[%c0_26, %c0_27] : memref<7x2xf32, #tpu.memory_space<vmem>>, vector<7x2xf32>
    %cst_28 = arith.constant dense<0.000000e+00> : vector<32x2xf32>
    %54 = tpu.matmul %52, %53, %cst_28 {dimension_numbers = #tpu.dot_dimension_numbers<[1], [0], [0], [1], [0, 0, 1, 1], [], []>} : vector<32x7xf32>, vector<7x2xf32>, vector<32x2xf32> -> vector<32x2xf32>
    %55 = tpu.transpose %54, [1, 0] : vector<32x2xf32> -> vector<2x32xf32>
    %56 = vector.extract_strided_slice %54 {offsets = [0, 1], sizes = [32, 1], strides = [1, 1]} : vector<32x2xf32> to vector<32x1xf32>
    %57 = vector.extract_strided_slice %55 {offsets = [0, 0], sizes = [1, 32], strides = [1, 1]} : vector<2x32xf32> to vector<1x32xf32>
    %58 = vector.broadcast %56 : vector<32x1xf32> to vector<32x32xf32>
    %59 = vector.broadcast %57 : vector<1x32xf32> to vector<32x32xf32>
    %60 = arith.addf %58, %59 : vector<32x32xf32>
    %cst_29 = arith.constant 0.000000e+00 : f32
    %61 = vector.broadcast %cst_29 : f32 to vector<32x32xf32>
    %62 = arith.cmpf ogt, %60, %61 : vector<32x32xf32>
    %cst_30 = arith.constant 2.000000e-01 : f32
    %63 = vector.broadcast %cst_30 : f32 to vector<32x32xf32>
    %64 = arith.mulf %63, %60 : vector<32x32xf32>
    %65 = arith.select %62, %60, %64 : vector<32x32xi1>, vector<32x32xf32>
    %c0_31 = arith.constant 0 : index
    %c0_32 = arith.constant 0 : index
    %66 = vector.load %arg5[%c0_31, %c0_32] : memref<32x256xf32, #tpu.memory_space<vmem>>, vector<32x32xf32>
    %67 = arith.addf %65, %66 : vector<32x32xf32>
    %cst_33 = arith.constant dense<0xFF800000> : vector<32xf32>
    %68 = vector.multi_reduction <maximumf>, %67, %cst_33 [1] : vector<32x32xf32> to vector<32xf32>
    %69 = vector.shape_cast %68 : vector<32xf32> to vector<32x1xf32>
    %70 = vector.broadcast %69 : vector<32x1xf32> to vector<32x32xf32>
    %71 = arith.subf %67, %70 : vector<32x32xf32>
    %72 = math.exp %71 : vector<32x32xf32>
    %cst_34 = arith.constant 1.000000e+00 : f32
    %73 = vector.broadcast %cst_34 : f32 to vector<32x1xf32>
    %74 = tpu.concatenate %52, %73 in 1 : vector<32x7xf32>, vector<32x1xf32> -> vector<32x8xf32>
    %cst_35 = arith.constant dense<0.000000e+00> : vector<32x8xf32>
    %75 = tpu.matmul %72, %74, %cst_35 {dimension_numbers = #tpu.dot_dimension_numbers<[1], [0], [0], [1], [0, 0, 1, 1], [], []>} : vector<32x32xf32>, vector<32x8xf32>, vector<32x8xf32> -> vector<32x8xf32>
    %76 = vector.extract_strided_slice %75 {offsets = [0, 0], sizes = [32, 7], strides = [1, 1]} : vector<32x8xf32> to vector<32x7xf32>
    %77 = vector.extract_strided_slice %75 {offsets = [0, 7], sizes = [32, 1], strides = [1, 1]} : vector<32x8xf32> to vector<32x1xf32>
    %78 = tpu.reciprocal %77 : vector<32x1xf32> -> vector<32x1xf32>
    %79 = vector.broadcast %78 : vector<32x1xf32> to vector<32x7xf32>
    %80 = arith.mulf %76, %79 : vector<32x7xf32>
    %c0_36 = arith.constant 0 : index
    %c0_37 = arith.constant 0 : index
    %81 = vector.load %arg9[%c0_36, %c0_37] : memref<1x7xf32, #tpu.memory_space<vmem>>, vector<1x7xf32>
    %82 = vector.broadcast %81 : vector<1x7xf32> to vector<32x7xf32>
    %83 = arith.addf %80, %82 : vector<32x7xf32>
    %cst_38 = arith.constant dense<0xFF800000> : vector<32xf32>
    %84 = vector.multi_reduction <maximumf>, %83, %cst_38 [1] : vector<32x7xf32> to vector<32xf32>
    %85 = vector.shape_cast %84 : vector<32xf32> to vector<32x1xf32>
    %86 = vector.broadcast %85 : vector<32x1xf32> to vector<32x7xf32>
    %87 = arith.subf %83, %86 : vector<32x7xf32>
    %88 = math.exp %87 : vector<32x7xf32>
    %cst_39 = arith.constant dense<0.000000e+00> : vector<32xf32>
    %89 = vector.multi_reduction <add>, %88, %cst_39 [1] : vector<32x7xf32> to vector<32xf32>
    %90 = vector.shape_cast %89 : vector<32xf32> to vector<32x1xf32>
    %91 = math.log %90 : vector<32x1xf32>
    %92 = vector.broadcast %91 : vector<32x1xf32> to vector<32x7xf32>
    %93 = arith.subf %87, %92 : vector<32x7xf32>
    %c0_40 = arith.constant 0 : index
    %c0_41 = arith.constant 0 : index
    %94 = vector.load %arg10[%c0_40, %c0_41] : memref<32x7xf32, #tpu.memory_space<vmem>>, vector<32x7xf32>
    tpu.vector_store %arg10[%c0_40, %c0_41], %93 {strides = array<i32>} : memref<32x7xf32, #tpu.memory_space<vmem>>, vector<32x7xf32>,
    return
  }
}

</mosaic_0001>

<llo_original>
// kernel: tpu_custom_call.1
$region0: #{tpu_custom_call.1}
  #allocation0 [shape = 'u32[]', space=smem, size = 0x4, offset = 0x4, fixed_abs, tag = 'smem constant byte address 0x4 - core index']
  #allocation1 [shape = 'u32[144,128]{1,0:T(1,128)}', space=vmem, size = 0x12000, scoped, tag = 'internal scratch']
  %s0 = inlined_call_operand.vmem [shape: f32[32,16], index: 0, kind: input, shape index: {}]
  %s1 = inlined_call_operand.vmem [shape: f32[16,64], index: 1, kind: input, shape index: {}]
  %s2 = inlined_call_operand.vmem [shape: f32[64,16], index: 2, kind: input, shape index: {}]
  %s3 = inlined_call_operand.vmem [shape: f32[8,256], index: 3, kind: input, shape index: {}]
  %s4 = inlined_call_operand.vmem [shape: f32[256,64], index: 4, kind: input, shape index: {}]
  %s5 = inlined_call_operand.vmem [shape: f32[32,256], index: 5, kind: input, shape index: {}]
  %s6 = inlined_call_operand.vmem [shape: f32[1,64], index: 6, kind: input, shape index: {}]
  %s7 = inlined_call_operand.vmem [shape: f32[64,7], index: 7, kind: input, shape index: {}]
  %s8 = inlined_call_operand.vmem [shape: f32[7,2], index: 8, kind: input, shape index: {}]
  %s9 = inlined_call_operand.vmem [shape: f32[1,7], index: 9, kind: input, shape index: {}]
  %s10 = inlined_call_operand.vmem [shape: f32[32,7], index: 10, kind: output, shape index: {}]
  %s11 = sld [smem:[#allocation0]]
  $region50: #{tpu_custom_call.1} parent=0
    _
  %s13 = ssub.s32 1, %s11
  %s14 = scalar_select 0, %s13, %s11
  // Predicated region
  $region2: #{tpu_custom_call.1} parent=0 // pred_check
    _
  $region3: #{tpu_custom_call.1} parent=0 // pred_check_branch
    %16 = sbr.rel (0) target = $region5
  $region4: #{tpu_custom_call.1} parent=0 // pred_region
    _
  $region5: #{tpu_custom_call.1} parent=0 // pred_fallthru
    _
  // Predicated region
  $region6: #{tpu_custom_call.1} parent=0 // pred_check
    _
  $region7: #{tpu_custom_call.1} parent=0 // pred_check_branch
    %18 = sbr.rel (0) target = $region9
  $region8: #{tpu_custom_call.1} parent=0 // pred_region
    _
  $region9: #{tpu_custom_call.1} parent=0 // pred_fallthru
    _
  // Predicated region
  $region10: #{tpu_custom_call.1} parent=0 // pred_check
    _
  $region11: #{tpu_custom_call.1} parent=0 // pred_check_branch
    %20 = sbr.rel (0) target = $region13
  $region12: #{tpu_custom_call.1} parent=0 // pred_region
    _
  $region13: #{tpu_custom_call.1} parent=0 // pred_fallthru
    _
  // Predicated region
  $region14: #{tpu_custom_call.1} parent=0 // pred_check
    _
  $region15: #{tpu_custom_call.1} parent=0 // pred_check_branch
    %22 = sbr.rel (0) target = $region17
  $region16: #{tpu_custom_call.1} parent=0 // pred_region
    _
  $region17: #{tpu_custom_call.1} parent=0 // pred_fallthru
    _
  // Predicated region
  $region18: #{tpu_custom_call.1} parent=0 // pred_check
    _
  $region19: #{tpu_custom_call.1} parent=0 // pred_check_branch
    %24 = sbr.rel (0) target = $region21
  $region20: #{tpu_custom_call.1} parent=0 // pred_region
    _
  $region21: #{tpu_custom_call.1} parent=0 // pred_fallthru
    _
  // Predicated region
  $region22: #{tpu_custom_call.1} parent=0 // pred_check
    _
  $region23: #{tpu_custom_call.1} parent=0 // pred_check_branch
    %26 = sbr.rel (0) target = $region25
  $region24: #{tpu_custom_call.1} parent=0 // pred_region
    _
  $region25: #{tpu_custom_call.1} parent=0 // pred_fallthru
    _
  // Predicated region
  $region26: #{tpu_custom_call.1} parent=0 // pred_check
    _
  $region27: #{tpu_custom_call.1} parent=0 // pred_check_branch
    %28 = sbr.rel (0) target = $region29
  $region28: #{tpu_custom_call.1} parent=0 // pred_region
    _
  $region29: #{tpu_custom_call.1} parent=0 // pred_fallthru
    _
  // Predicated region
  $region30: #{tpu_custom_call.1} parent=0 // pred_check
    _
  $region31: #{tpu_custom_call.1} parent=0 // pred_check_branch
    %30 = sbr.rel (0) target = $region33
  $region32: #{tpu_custom_call.1} parent=0 // pred_region
    _
  $region33: #{tpu_custom_call.1} parent=0 // pred_fallthru
    _
  // Predicated region
  $region34: #{tpu_custom_call.1} parent=0 // pred_check
    _
  $region35: #{tpu_custom_call.1} parent=0 // pred_check_branch
    %32 = sbr.rel (0) target = $region37
  $region36: #{tpu_custom_call.1} parent=0 // pred_region
    _
  $region37: #{tpu_custom_call.1} parent=0 // pred_fallthru
    _
  // Predicated region
  $region38: #{tpu_custom_call.1} parent=0 // pred_check
    _
  $region39: #{tpu_custom_call.1} parent=0 // pred_check_branch
    %34 = sbr.rel (0) target = $region41
  $region40: #{tpu_custom_call.1} parent=0 // pred_region
    _
  $region41: #{tpu_custom_call.1} parent=0 // pred_fallthru
    _
  %v35 = vld [vmem:[%s0] sm:$0xff]
  %v36 = vld [vmem:[%s0 + $0x8] sm:$0xff]
  %v37 = vld [vmem:[%s0 + $0x10] sm:$0xff]
  %v38 = vld [vmem:[%s0 + $0x18] sm:$0xff]
  %v39 = vld [vmem:[%s1] sm:$0xff]
  %v40 = vld [vmem:[%s1 + $0x8] sm:$0xff]
  %vm41 = vcmask 130048
  %v43 = vsel %vm41, %v35, 0
  %v46 = vsel %vm41, %v36, 0
  %v49 = vsel %vm41, %v37, 0
  %v52 = vsel %vm41, %v38, 0
  %54 = vmatprep.subr.mxu0 0.0
  %55 = vmatpush1.msra.mxu0 %v39
  %56 = vmatprep.subr.mxu0 0.0
  %57 = vmatpush1.msra.mxu0 %v40
  %58 = vmatprep.subr.mxu0 0.0
  %59 = vmatpush1.msra.mxu0 0.0
  %60 = vmatprep.subr.mxu0 0.0
  %61 = vmatpush1.msra.mxu0 0.0
  %62 = vmatprep.subr.mxu0 0.0
  %63 = vmatpush1.msra.mxu0 0.0
  %64 = vmatprep.subr.mxu0 0.0
  %65 = vmatpush1.msra.mxu0 0.0
  %66 = vmatprep.subr.mxu0 0.0
  %67 = vmatpush1.msra.mxu0 0.0
  %68 = vmatprep.subr.mxu0 0.0
  %69 = vmatpush1.msra.mxu0 0.0
  %70 = vmatprep.subr.mxu0 0.0
  %71 = vmatpush1.msra.mxu0 0.0
  %72 = vmatprep.subr.mxu0 0.0
  %73 = vmatpush1.msra.mxu0 0.0
  %74 = vmatprep.subr.mxu0 0.0
  %75 = vmatpush1.msra.mxu0 0.0
  %76 = vmatprep.subr.mxu0 0.0
  %77 = vmatpush1.msra.mxu0 0.0
  %78 = vmatprep.subr.mxu0 0.0
  %79 = vmatpush1.msra.mxu0 0.0
  %80 = vmatprep.subr.mxu0 0.0
  %81 = vmatpush1.msra.mxu0 0.0
  %82 = vmatprep.subr.mxu0 0.0
  %83 = vmatpush1.msra.mxu0 0.0
  %84 = vmatprep.subr.mxu0 0.0
  %85 = vmatpush1.msra.mxu0 0.0
  %86 = vmatprep.subr.mxu0 0.0
  %87 = vmatpush1.msra.mxu0 0.0
  %88 = vmatprep.subr.mxu0 0.0
  %89 = vmatpush1.msra.mxu0 0.0
  %90 = vmatprep.subr.mxu0 0.0
  %91 = vmatpush1.msra.mxu0 0.0
  %92 = vmatprep.subr.mxu0 0.0
  %93 = vmatpush1.msra.mxu0 0.0
  %94 = vmatprep.subr.mxu0 0.0
  %95 = vmatpush1.msra.mxu0 0.0
  %96 = vmatprep.subr.mxu0 0.0
  %97 = vmatpush1.msra.mxu0 0.0
  %98 = vmatprep.subr.mxu0 0.0
  %99 = vmatpush1.msra.mxu0 0.0
  %100 = vmatprep.subr.mxu0 0.0
  %101 = vmatpush1.msra.mxu0 0.0
  %102 = vmatprep.subr.mxu0 0.0
  %103 = vmatpush1.msra.mxu0 0.0
  %104 = vmatprep.subr.mxu0 0.0
  %105 = vmatpush1.msra.mxu0 0.0
  %106 = vmatprep.subr.mxu0 0.0
  %107 = vmatpush1.msra.mxu0 0.0
  %108 = vmatprep.subr.mxu0 0.0
  %109 = vmatpush1.msra.mxu0 0.0
  %110 = vmatprep.subr.mxu0 0.0
  %111 = vmatpush1.msra.mxu0 0.0
  %112 = vmatprep.subr.mxu0 0.0
  %113 = vmatpush1.msra.mxu0 0.0
  %114 = vmatprep.subr.mxu0 0.0
  %115 = vmatpush1.msra.mxu0 0.0
  %116 = vmatprep.subr.mxu0 0.0
  %117 = vmatpush1.msra.mxu0 0.0
  %118 = vmatprep.mubr.f32.mxu0 0.0
  %119 = vmatmul.mubr.f32.gmra.mrb[0].mxu0 %v43
  %v120 = vpop.f32.mrb[0].mxu0
  %v121 = vadd.f32 0.0, %v120
  %v122 = vpop.f32.mrb[0].mxu0
  %123 = vmatprep.mubr.f32.mxu0 0.0
  %124 = vmatmul.mubr.f32.gmra.mrb[0].mxu0 %v46
  %v125 = vpop.f32.mrb[0].mxu0
  %v126 = vadd.f32 0.0, %v125
  %v127 = vpop.f32.mrb[0].mxu0
  %128 = vmatprep.mubr.f32.mxu0 0.0
  %129 = vmatmul.mubr.f32.gmra.mrb[0].mxu0 %v49
  %v130 = vpop.f32.mrb[0].mxu0
  %v131 = vadd.f32 0.0, %v130
  %v132 = vpop.f32.mrb[0].mxu0
  %133 = vmatprep.mubr.f32.mxu0 0.0
  %134 = vmatmul.mubr.f32.gmra.mrb[0].mxu0 %v52
  %v135 = vpop.f32.mrb[0].mxu0
  %v136 = vadd.f32 0.0, %v135
  %v137 = vpop.f32.mrb[0].mxu0
  %138 = vdwg.mxu0
  %v139 = vld [vmem:[%s2] sm:$0xff]
  %v140 = vld [vmem:[%s2 + $0x8] sm:$0xff]
  %v141 = vld [vmem:[%s2 + $0x10] sm:$0xff]
  %v142 = vld [vmem:[%s2 + $0x18] sm:$0xff]
  %v143 = vld [vmem:[%s2 + $0x20] sm:$0xff]
  %v144 = vld [vmem:[%s2 + $0x28] sm:$0xff]
  %v145 = vld [vmem:[%s2 + $0x30] sm:$0xff]
  %v146 = vld [vmem:[%s2 + $0x38] sm:$0xff]
  %vm147 = vcmask 523264
  %v149 = vsel %vm147, %v121, 0
  %v152 = vsel %vm147, %v126, 0
  %v155 = vsel %vm147, %v131, 0
  %v158 = vsel %vm147, %v136, 0
  %160 = vmatprep.subr.mxu0 0.0
  %161 = vmatpush1.msra.mxu0 %v139
  %162 = vmatprep.subr.mxu0 0.0
  %163 = vmatpush1.msra.mxu0 %v140
  %164 = vmatprep.subr.mxu0 0.0
  %165 = vmatpush1.msra.mxu0 %v141
  %166 = vmatprep.subr.mxu0 0.0
  %167 = vmatpush1.msra.mxu0 %v142
  %168 = vmatprep.subr.mxu0 0.0
  %169 = vmatpush1.msra.mxu0 %v143
  %170 = vmatprep.subr.mxu0 0.0
  %171 = vmatpush1.msra.mxu0 %v144
  %172 = vmatprep.subr.mxu0 0.0
  %173 = vmatpush1.msra.mxu0 %v145
  %174 = vmatprep.subr.mxu0 0.0
  %175 = vmatpush1.msra.mxu0 %v146
  %176 = vmatprep.subr.mxu0 0.0
  %177 = vmatpush1.msra.mxu0 0.0
  %178 = vmatprep.subr.mxu0 0.0
  %179 = vmatpush1.msra.mxu0 0.0
  %180 = vmatprep.subr.mxu0 0.0
  %181 = vmatpush1.msra.mxu0 0.0
  %182 = vmatprep.subr.mxu0 0.0
  %183 = vmatpush1.msra.mxu0 0.0
  %184 = vmatprep.subr.mxu0 0.0
  %185 = vmatpush1.msra.mxu0 0.0
  %186 = vmatprep.subr.mxu0 0.0
  %187 = vmatpush1.msra.mxu0 0.0
  %188 = vmatprep.subr.mxu0 0.0
  %189 = vmatpush1.msra.mxu0 0.0
  %190 = vmatprep.subr.mxu0 0.0
  %191 = vmatpush1.msra.mxu0 0.0
  %192 = vmatprep.subr.mxu0 0.0
  %193 = vmatpush1.msra.mxu0 0.0
  %194 = vmatprep.subr.mxu0 0.0
  %195 = vmatpush1.msra.mxu0 0.0
  %196 = vmatprep.subr.mxu0 0.0
  %197 = vmatpush1.msra.mxu0 0.0
  %198 = vmatprep.subr.mxu0 0.0
  %199 = vmatpush1.msra.mxu0 0.0
  %200 = vmatprep.subr.mxu0 0.0
  %201 = vmatpush1.msra.mxu0 0.0
  %202 = vmatprep.subr.mxu0 0.0
  %203 = vmatpush1.msra.mxu0 0.0
  %204 = vmatprep.subr.mxu0 0.0
  %205 = vmatpush1.msra.mxu0 0.0
  %206 = vmatprep.subr.mxu0 0.0
  %207 = vmatpush1.msra.mxu0 0.0
  %208 = vmatprep.subr.mxu0 0.0
  %209 = vmatpush1.msra.mxu0 0.0
  %210 = vmatprep.subr.mxu0 0.0
  %211 = vmatpush1.msra.mxu0 0.0
  %212 = vmatprep.subr.mxu0 0.0
  %213 = vmatpush1.msra.mxu0 0.0
  %214 = vmatprep.subr.mxu0 0.0
  %215 = vmatpush1.msra.mxu0 0.0
  %216 = vmatprep.subr.mxu0 0.0
  %217 = vmatpush1.msra.mxu0 0.0
  %218 = vmatprep.subr.mxu0 0.0
  %219 = vmatpush1.msra.mxu0 0.0
  %220 = vmatprep.subr.mxu0 0.0
  %221 = vmatpush1.msra.mxu0 0.0
  %222 = vmatprep.subr.mxu0 0.0
  %223 = vmatpush1.msra.mxu0 0.0
  %224 = vmatprep.mubr.f32.mxu0 0.0
  %225 = vmatmul.mubr.f32.gmra.mrb[0].mxu0 %v149
  %v226 = vpop.f32.mrb[0].mxu0
  %v227 = vadd.f32 0.0, %v226
  %v228 = vpop.f32.mrb[0].mxu0
  %229 = vmatprep.mubr.f32.mxu0 0.0
  %230 = vmatmul.mubr.f32.gmra.mrb[0].mxu0 %v152
  %v231 = vpop.f32.mrb[0].mxu0
  %v232 = vadd.f32 0.0, %v231
  %v233 = vpop.f32.mrb[0].mxu0
  %234 = vmatprep.mubr.f32.mxu0 0.0
  %235 = vmatmul.mubr.f32.gmra.mrb[0].mxu0 %v155
  %v236 = vpop.f32.mrb[0].mxu0
  %v237 = vadd.f32 0.0, %v236
  %v238 = vpop.f32.mrb[0].mxu0
  %239 = vmatprep.mubr.f32.mxu0 0.0
  %240 = vmatmul.mubr.f32.gmra.mrb[0].mxu0 %v158
  %v241 = vpop.f32.mrb[0].mxu0
  %v242 = vadd.f32 0.0, %v241
  %v243 = vpop.f32.mrb[0].mxu0
  %244 = vdwg.mxu0
  %245 = vxpose.xlu0.b32.start [1/16] %v227, 128
  %246 = vxpose.xlu0.b32.cont [2/16] %v232, 128
  %247 = vxpose.xlu0.b32.cont [3/16] %v237, 128
  %248 = vxpose.xlu0.b32.cont [4/16] %v242, 128
  %249 = vxpose.xlu0.b32.cont [5/16] 0.0, 128
  %250 = vxpose.xlu0.b32.cont [6/16] 0.0, 128
  %251 = vxpose.xlu0.b32.cont [7/16] 0.0, 128
  %252 = vxpose.xlu0.b32.cont [8/16] 0.0, 128
  %253 = vxpose.xlu0.b32.cont [9/16] 0.0, 128
  %254 = vxpose.xlu0.b32.cont [10/16] 0.0, 128
  %255 = vxpose.xlu0.b32.cont [11/16] 0.0, 128
  %256 = vxpose.xlu0.b32.cont [12/16] 0.0, 128
  %257 = vxpose.xlu0.b32.cont [13/16] 0.0, 128
  %258 = vxpose.xlu0.b32.cont [14/16] 0.0, 128
  %259 = vxpose.xlu0.b32.cont [15/16] 0.0, 128
  %260 = vxpose.xlu0.b32.end [16/16] 0.0, 128
  %v261 = vpop.trf.xlu0
  %v262 = vpop.trf.xlu0
  %v263 = vpop.trf.xlu0
  %v264 = vpop.trf.xlu0
  %v265 = vpop.trf.xlu0
  %v266 = vpop.trf.xlu0
  %v267 = vpop.trf.xlu0
  %v268 = vpop.trf.xlu0
  %v269 = vpop.trf.xlu0
  %v270 = vpop.trf.xlu0
  %v271 = vpop.trf.xlu0
  %v272 = vpop.trf.xlu0
  %v273 = vpop.trf.xlu0
  %v274 = vpop.trf.xlu0
  %v275 = vpop.trf.xlu0
  %v276 = vpop.trf.xlu0
  %v278 = vrot.slane %v261, 1
  %279 = vrot.lane.b32.xlu0 %v278, 32
  %v280 = vpop.permute.xlu0 %279
  %v282 = vrot.slane %v261, 2
  %283 = vrot.lane.b32.xlu0 %v282, 64
  %v284 = vpop.permute.xlu0 %283
  %v286 = vrot.slane %v261, 3
  %287 = vrot.lane.b32.xlu0 %v286, 96
  %v288 = vpop.permute.xlu0 %287
  %v290 = vrot.slane %v261, 4
  %v292 = vrot.slane %v261, 5
  %293 = vrot.lane.b32.xlu0 %v292, 32
  %v294 = vpop.permute.xlu0 %293
  %v296 = vrot.slane %v261, 6
  %297 = vrot.lane.b32.xlu0 %v296, 64
  %v298 = vpop.permute.xlu0 %297
  %v300 = vrot.slane %v261, 7
  %301 = vrot.lane.b32.xlu0 %v300, 96
  %v302 = vpop.permute.xlu0 %301
  %vm304 = vcmask 261120
  %v305 = vsel %vm304, %v261, %v280
  %v306 = vsel %vm147, %v305, %v284
  %vm307 = vcmask 785408
  %v308 = vsel %vm307, %v306, %v288
  %v309 = vsel %vm304, %v290, %v294
  %v310 = vsel %vm147, %v309, %v298
  %v311 = vsel %vm307, %v310, %v302
  %v312 = vld [vmem:[%s3] sm:$0xff]
  %v313 = vld [vmem:[%s3 + $0x8] sm:$0xff]
  %v314 = vlaneseq
  %v315 = vshrl.u32 %v314, 7
  %v316 = vsub.s32 0, %v315
  %v317 = vrot.slane %v308, %v316
  %v318 = vlaneseq
  %v319 = vshrl.u32 %v318, 7
  %v320 = vsub.s32 0, %v319
  %v321 = vrot.slane %v311, %v320
  %326 = vrot.lane.b32.xlu0 %v227, 120
  %v327 = vpop.permute.xlu0 %326
  %328 = vrot.lane.b32.xlu0 %v232, 120
  %v329 = vpop.permute.xlu0 %328
  %330 = vrot.lane.b32.xlu0 %v237, 120
  %v331 = vpop.permute.xlu0 %330
  %332 = vrot.lane.b32.xlu0 %v242, 120
  %v333 = vpop.permute.xlu0 %332
  %vm334 = vcmask 64512
  %v335 = vsel %vm334, %v327, 0
  %v337 = vsel %vm334, %v329, 0
  %v339 = vsel %vm334, %v331, 0
  %v341 = vsel %vm334, %v333, 0
  %343 = vmatprep.subr.mxu0 %v313
  %344 = vmatpush1.msra.mxu0 %v312
  %345 = vmatprep.subr.mxu0 0.0
  %346 = vmatpush1.msra.mxu0 0.0
  %347 = vmatprep.subr.mxu0 0.0
  %348 = vmatpush1.msra.mxu0 0.0
  %349 = vmatprep.subr.mxu0 0.0
  %350 = vmatpush1.msra.mxu0 0.0
  %351 = vmatprep.subr.mxu0 0.0
  %352 = vmatpush1.msra.mxu0 0.0
  %353 = vmatprep.subr.mxu0 0.0
  %354 = vmatpush1.msra.mxu0 0.0
  %355 = vmatprep.subr.mxu0 0.0
  %356 = vmatpush1.msra.mxu0 0.0
  %357 = vmatprep.subr.mxu0 0.0
  %358 = vmatpush1.msra.mxu0 0.0
  %359 = vmatprep.subr.mxu0 0.0
  %360 = vmatpush1.msra.mxu0 0.0
  %361 = vmatprep.subr.mxu0 0.0
  %362 = vmatpush1.msra.mxu0 0.0
  %363 = vmatprep.subr.mxu0 0.0
  %364 = vmatpush1.msra.mxu0 0.0
  %365 = vmatprep.subr.mxu0 0.0
  %366 = vmatpush1.msra.mxu0 0.0
  %367 = vmatprep.subr.mxu0 0.0
  %368 = vmatpush1.msra.mxu0 0.0
  %369 = vmatprep.subr.mxu0 0.0
  %370 = vmatpush1.msra.mxu0 0.0
  %371 = vmatprep.subr.mxu0 0.0
  %372 = vmatpush1.msra.mxu0 0.0
  %373 = vmatprep.subr.mxu0 0.0
  %374 = vmatpush1.msra.mxu0 0.0
  %375 = vmatprep.subr.mxu0 0.0
  %376 = vmatpush1.msra.mxu0 0.0
  %377 = vmatprep.subr.mxu0 0.0
  %378 = vmatpush1.msra.mxu0 0.0
  %379 = vmatprep.subr.mxu0 0.0
  %380 = vmatpush1.msra.mxu0 0.0
  %381 = vmatprep.subr.mxu0 0.0
  %382 = vmatpush1.msra.mxu0 0.0
  %383 = vmatprep.subr.mxu0 0.0
  %384 = vmatpush1.msra.mxu0 0.0
  %385 = vmatprep.subr.mxu0 0.0
  %386 = vmatpush1.msra.mxu0 0.0
  %387 = vmatprep.subr.mxu0 0.0
  %388 = vmatpush1.msra.mxu0 0.0
  %389 = vmatprep.subr.mxu0 0.0
  %390 = vmatpush1.msra.mxu0 0.0
  %391 = vmatprep.subr.mxu0 0.0
  %392 = vmatpush1.msra.mxu0 0.0
  %393 = vmatprep.subr.mxu0 0.0
  %394 = vmatpush1.msra.mxu0 0.0
  %395 = vmatprep.subr.mxu0 0.0
  %396 = vmatpush1.msra.mxu0 0.0
  %397 = vmatprep.subr.mxu0 0.0
  %398 = vmatpush1.msra.mxu0 0.0
  %399 = vmatprep.subr.mxu0 0.0
  %400 = vmatpush1.msra.mxu0 0.0
  %401 = vmatprep.subr.mxu0 0.0
  %402 = vmatpush1.msra.mxu0 0.0
  %403 = vmatprep.subr.mxu0 0.0
  %404 = vmatpush1.msra.mxu0 0.0
  %405 = vmatprep.subr.mxu0 0.0
  %406 = vmatpush1.msra.mxu0 0.0
  %407 = vmatprep.mubr.f32.mxu0 0.0
  %408 = vmatmul.mubr.f32.gmra.mrb[0].mxu0 %v335
  %v409 = vpop.f32.mrb[0].mxu0
  %v410 = vadd.f32 %v317, %v409
  %v411 = vpop.f32.mrb[0].mxu0
  %v412 = vadd.f32 %v321, %v411
  %413 = vmatprep.mubr.f32.mxu0 0.0
  %414 = vmatmul.mubr.f32.gmra.mrb[0].mxu0 %v337
  %v415 = vpop.f32.mrb[0].mxu0
  %v416 = vadd.f32 %v317, %v415
  %v417 = vpop.f32.mrb[0].mxu0
  %v418 = vadd.f32 %v321, %v417
  %419 = vmatprep.mubr.f32.mxu0 0.0
  %420 = vmatmul.mubr.f32.gmra.mrb[0].mxu0 %v339
  %v421 = vpop.f32.mrb[0].mxu0
  %v422 = vadd.f32 %v317, %v421
  %v423 = vpop.f32.mrb[0].mxu0
  %v424 = vadd.f32 %v321, %v423
  %425 = vmatprep.mubr.f32.mxu0 0.0
  %426 = vmatmul.mubr.f32.gmra.mrb[0].mxu0 %v341
  %v427 = vpop.f32.mrb[0].mxu0
  %v428 = vadd.f32 %v317, %v427
  %v429 = vpop.f32.mrb[0].mxu0
  %v430 = vadd.f32 %v321, %v429
  %431 = vdwg.mxu0
  %vm432 = vcmp.gt.f32.partialorder %v410, 0.0
  %vm433 = vcmp.gt.f32.partialorder %v412, 0.0
  %vm434 = vcmp.gt.f32.partialorder %v416, 0.0
  %vm435 = vcmp.gt.f32.partialorder %v418, 0.0
  %vm436 = vcmp.gt.f32.partialorder %v422, 0.0
  %vm437 = vcmp.gt.f32.partialorder %v424, 0.0
  %vm438 = vcmp.gt.f32.partialorder %v428, 0.0
  %vm439 = vcmp.gt.f32.partialorder %v430, 0.0
  %v440 = vmul.f32 %v410, 0.2
  %v441 = vmul.f32 %v412, 0.2
  %v442 = vmul.f32 %v416, 0.2
  %v443 = vmul.f32 %v418, 0.2
  %v444 = vmul.f32 %v422, 0.2
  %v445 = vmul.f32 %v424, 0.2
  %v446 = vmul.f32 %v428, 0.2
  %v447 = vmul.f32 %v430, 0.2
  %v448 = vsel %vm432, %v410, %v440
  %v449 = vsel %vm433, %v412, %v441
  %v450 = vsel %vm434, %v416, %v442
  %v451 = vsel %vm435, %v418, %v443
  %v452 = vsel %vm436, %v422, %v444
  %v453 = vsel %vm437, %v424, %v445
  %v454 = vsel %vm438, %v428, %v446
  %v455 = vsel %vm439, %v430, %v447
  %v456 = vld [vmem:[%s5] sm:$0xff]
  %v457 = vld [vmem:[%s5 + $0x8] sm:$0xff]
  %v458 = vld [vmem:[%s5 + $0x10] sm:$0xff]
  %v459 = vld [vmem:[%s5 + $0x18] sm:$0xff]
  %v460 = vld [vmem:[%s5 + $0x20] sm:$0xff]
  %v461 = vld [vmem:[%s5 + $0x28] sm:$0xff]
  %v462 = vld [vmem:[%s5 + $0x30] sm:$0xff]
  %v463 = vld [vmem:[%s5 + $0x38] sm:$0xff]
  %v464 = vadd.f32 %v448, %v456
  %v465 = vadd.f32 %v449, %v457
  %v466 = vadd.f32 %v450, %v458
  %v467 = vadd.f32 %v451, %v459
  %v468 = vadd.f32 %v452, %v460
  %v469 = vadd.f32 %v453, %v461
  %v470 = vadd.f32 %v454, %v462
  %v471 = vadd.f32 %v455, %v463
  %v472 = vmax.f32 %v464, %v465
  %473 = vmax.xlane.f32.xlu0 %v472
  %v474 = vpop.xlane.xlu0 %473
  %v475 = vmax.f32 %v466, %v467
  %476 = vmax.xlane.f32.xlu0 %v475
  %v477 = vpop.xlane.xlu0 %476
  %v478 = vmax.f32 %v468, %v469
  %479 = vmax.xlane.f32.xlu0 %v478
  %v480 = vpop.xlane.xlu0 %479
  %v481 = vmax.f32 %v470, %v471
  %482 = vmax.xlane.f32.xlu0 %v481
  %v483 = vpop.xlane.xlu0 %482
  %v484 = vsub.f32 %v464, %v474
  %v485 = vsub.f32 %v465, %v474
  %v486 = vsub.f32 %v466, %v477
  %v487 = vsub.f32 %v467, %v477
  %v488 = vsub.f32 %v468, %v480
  %v489 = vsub.f32 %v469, %v480
  %v490 = vsub.f32 %v470, %v483
  %v491 = vsub.f32 %v471, %v483
  %v492 = vmul.f32 %v484, 1.442695
  %v493 = vpow.pop %v492
  %v494 = vmul.f32 %v485, 1.442695
  %v495 = vpow.pop %v494
  %v496 = vmul.f32 %v486, 1.442695
  %v497 = vpow.pop %v496
  %v498 = vmul.f32 %v487, 1.442695
  %v499 = vpow.pop %v498
  %v500 = vmul.f32 %v488, 1.442695
  %v501 = vpow.pop %v500
  %v502 = vmul.f32 %v489, 1.442695
  %v503 = vpow.pop %v502
  %v504 = vmul.f32 %v490, 1.442695
  %v505 = vpow.pop %v504
  %v506 = vmul.f32 %v491, 1.442695
  %v507 = vpow.pop %v506
  %v508 = vld [vmem:[%s4] sm:$0xff]
  %v509 = vld [vmem:[%s4 + $0x8] sm:$0xff]
  %v510 = vld [vmem:[%s4 + $0x10] sm:$0xff]
  %v511 = vld [vmem:[%s4 + $0x18] sm:$0xff]
  %v512 = vld [vmem:[%s4 + $0x20] sm:$0xff]
  %v513 = vld [vmem:[%s4 + $0x28] sm:$0xff]
  %v514 = vld [vmem:[%s4 + $0x30] sm:$0xff]
  %v515 = vld [vmem:[%s4 + $0x38] sm:$0xff]
  %v516 = vld [vmem:[%s4 + $0x40] sm:$0xff]
  %v517 = vld [vmem:[%s4 + $0x48] sm:$0xff]
  %v518 = vld [vmem:[%s4 + $0x50] sm:$0xff]
  %v519 = vld [vmem:[%s4 + $0x58] sm:$0xff]
  %v520 = vld [vmem:[%s4 + $0x60] sm:$0xff]
  %v521 = vld [vmem:[%s4 + $0x68] sm:$0xff]
  %v522 = vld [vmem:[%s4 + $0x70] sm:$0xff]
  %v523 = vld [vmem:[%s4 + $0x78] sm:$0xff]
  %v524 = vld [vmem:[%s4 + $0x80] sm:$0xff]
  %v525 = vld [vmem:[%s4 + $0x88] sm:$0xff]
  %v526 = vld [vmem:[%s4 + $0x90] sm:$0xff]
  %v527 = vld [vmem:[%s4 + $0x98] sm:$0xff]
  %v528 = vld [vmem:[%s4 + $0xa0] sm:$0xff]
  %v529 = vld [vmem:[%s4 + $0xa8] sm:$0xff]
  %v530 = vld [vmem:[%s4 + $0xb0] sm:$0xff]
  %v531 = vld [vmem:[%s4 + $0xb8] sm:$0xff]
  %v532 = vld [vmem:[%s4 + $0xc0] sm:$0xff]
  %v533 = vld [vmem:[%s4 + $0xc8] sm:$0xff]
  %v534 = vld [vmem:[%s4 + $0xd0] sm:$0xff]
  %v535 = vld [vmem:[%s4 + $0xd8] sm:$0xff]
  %v536 = vld [vmem:[%s4 + $0xe0] sm:$0xff]
  %v537 = vld [vmem:[%s4 + $0xe8] sm:$0xff]
  %v538 = vld [vmem:[%s4 + $0xf0] sm:$0xff]
  %v539 = vld [vmem:[%s4 + $0xf8] sm:$0xff]
  %540 = vmatprep.subr.mxu0 0.0
  %541 = vmatpush1.msra.mxu0 %v508
  %542 = vmatprep.subr.mxu0 0.0
  %543 = vmatpush1.msra.mxu0 %v509
  %544 = vmatprep.subr.mxu0 0.0
  %545 = vmatpush1.msra.mxu0 %v510
  %546 = vmatprep.subr.mxu0 0.0
  %547 = vmatpush1.msra.mxu0 %v511
  %548 = vmatprep.subr.mxu0 0.0
  %549 = vmatpush1.msra.mxu0 %v512
  %550 = vmatprep.subr.mxu0 0.0
  %551 = vmatpush1.msra.mxu0 %v513
  %552 = vmatprep.subr.mxu0 0.0
  %553 = vmatpush1.msra.mxu0 %v514
  %554 = vmatprep.subr.mxu0 0.0
  %555 = vmatpush1.msra.mxu0 %v515
  %556 = vmatprep.subr.mxu0 0.0
  %557 = vmatpush1.msra.mxu0 %v516
  %558 = vmatprep.subr.mxu0 0.0
  %559 = vmatpush1.msra.mxu0 %v517
  %560 = vmatprep.subr.mxu0 0.0
  %561 = vmatpush1.msra.mxu0 %v518
  %562 = vmatprep.subr.mxu0 0.0
  %563 = vmatpush1.msra.mxu0 %v519
  %564 = vmatprep.subr.mxu0 0.0
  %565 = vmatpush1.msra.mxu0 %v520
  %566 = vmatprep.subr.mxu0 0.0
  %567 = vmatpush1.msra.mxu0 %v521
  %568 = vmatprep.subr.mxu0 0.0
  %569 = vmatpush1.msra.mxu0 %v522
  %570 = vmatprep.subr.mxu0 0.0
  %571 = vmatpush1.msra.mxu0 %v523
  %572 = vmatprep.subr.mxu0 0.0
  %573 = vmatpush1.msra.mxu0 %v524
  %574 = vmatprep.subr.mxu0 0.0
  %575 = vmatpush1.msra.mxu0 %v525
  %576 = vmatprep.subr.mxu0 0.0
  %577 = vmatpush1.msra.mxu0 %v526
  %578 = vmatprep.subr.mxu0 0.0
  %579 = vmatpush1.msra.mxu0 %v527
  %580 = vmatprep.subr.mxu0 0.0
  %581 = vmatpush1.msra.mxu0 %v528
  %582 = vmatprep.subr.mxu0 0.0
  %583 = vmatpush1.msra.mxu0 %v529
  %584 = vmatprep.subr.mxu0 0.0
  %585 = vmatpush1.msra.mxu0 %v530
  %586 = vmatprep.subr.mxu0 0.0
  %587 = vmatpush1.msra.mxu0 %v531
  %588 = vmatprep.subr.mxu0 0.0
  %589 = vmatpush1.msra.mxu0 %v532
  %590 = vmatprep.subr.mxu0 0.0
  %591 = vmatpush1.msra.mxu0 %v533
  %592 = vmatprep.subr.mxu0 0.0
  %593 = vmatpush1.msra.mxu0 %v534
  %594 = vmatprep.subr.mxu0 0.0
  %595 = vmatpush1.msra.mxu0 %v535
  %596 = vmatprep.subr.mxu0 0.0
  %597 = vmatpush1.msra.mxu0 %v536
  %598 = vmatprep.subr.mxu0 0.0
  %599 = vmatpush1.msra.mxu0 %v537
  %600 = vmatprep.subr.mxu0 0.0
  %601 = vmatpush1.msra.mxu0 %v538
  %602 = vmatprep.subr.mxu0 0.0
  %603 = vmatpush1.msra.mxu0 %v539
  %604 = vmatprep.mubr.f32.mxu0 %v495
  %605 = vmatmul.mubr.f32.gmra.mrb[0].mxu0 %v493
  %v606 = vpop.f32.mrb[0].mxu0
  %v607 = vadd.f32 0.0, %v606
  %v608 = vpop.f32.mrb[0].mxu0
  %609 = vmatprep.mubr.f32.mxu0 %v499
  %610 = vmatmul.mubr.f32.gmra.mrb[0].mxu0 %v497
  %v611 = vpop.f32.mrb[0].mxu0
  %v612 = vadd.f32 0.0, %v611
  %v613 = vpop.f32.mrb[0].mxu0
  %614 = vmatprep.mubr.f32.mxu0 %v503
  %615 = vmatmul.mubr.f32.gmra.mrb[0].mxu0 %v501
  %v616 = vpop.f32.mrb[0].mxu0
  %v617 = vadd.f32 0.0, %v616
  %v618 = vpop.f32.mrb[0].mxu0
  %619 = vmatprep.mubr.f32.mxu0 %v507
  %620 = vmatmul.mubr.f32.gmra.mrb[0].mxu0 %v505
  %v621 = vpop.f32.mrb[0].mxu0
  %v622 = vadd.f32 0.0, %v621
  %v623 = vpop.f32.mrb[0].mxu0
  %624 = vdwg.mxu0
  %v625 = vrcp.pop %v607
  %v626 = vrcp.pop %v612
  %v627 = vrcp.pop %v617
  %v628 = vrcp.pop %v622
  %v629 = vmul.f32 %v121, %v508
  %v630 = vmul.f32 %v126, %v509
  %v631 = vmul.f32 %v131, %v510
  %v632 = vmul.f32 %v136, %v511
  %v633 = vmul.f32 %v121, %v512
  %v634 = vmul.f32 %v126, %v513
  %v635 = vmul.f32 %v131, %v514
  %v636 = vmul.f32 %v136, %v515
  %v637 = vmul.f32 %v121, %v516
  %v638 = vmul.f32 %v126, %v517
  %v639 = vmul.f32 %v131, %v518
  %v640 = vmul.f32 %v136, %v519
  %v641 = vmul.f32 %v121, %v520
  %v642 = vmul.f32 %v126, %v521
  %v643 = vmul.f32 %v131, %v522
  %v644 = vmul.f32 %v136, %v523
  %v645 = vmul.f32 %v121, %v524
  %v646 = vmul.f32 %v126, %v525
  %v647 = vmul.f32 %v131, %v526
  %v648 = vmul.f32 %v136, %v527
  %v649 = vmul.f32 %v121, %v528
  %v650 = vmul.f32 %v126, %v529
  %v651 = vmul.f32 %v131, %v530
  %v652 = vmul.f32 %v136, %v531
  %v653 = vmul.f32 %v121, %v532
  %v654 = vmul.f32 %v126, %v533
  %v655 = vmul.f32 %v131, %v534
  %v656 = vmul.f32 %v136, %v535
  %v657 = vmul.f32 %v121, %v536
  %v658 = vmul.f32 %v126, %v537
  %v659 = vmul.f32 %v131, %v538
  %v660 = vmul.f32 %v136, %v539
  %661 = vmatprep.subr.mxu0 0.0
  %662 = vmatpush1.msra.mxu0 %v629
  %663 = vmatprep.subr.mxu0 0.0
  %664 = vmatpush1.msra.mxu0 %v630
  %665 = vmatprep.subr.mxu0 0.0
  %666 = vmatpush1.msra.mxu0 %v631
  %667 = vmatprep.subr.mxu0 0.0
  %668 = vmatpush1.msra.mxu0 %v632
  %669 = vmatprep.subr.mxu0 0.0
  %670 = vmatpush1.msra.mxu0 %v633
  %671 = vmatprep.subr.mxu0 0.0
  %672 = vmatpush1.msra.mxu0 %v634
  %673 = vmatprep.subr.mxu0 0.0
  %674 = vmatpush1.msra.mxu0 %v635
  %675 = vmatprep.subr.mxu0 0.0
  %676 = vmatpush1.msra.mxu0 %v636
  %677 = vmatprep.subr.mxu0 0.0
  %678 = vmatpush1.msra.mxu0 %v637
  %679 = vmatprep.subr.mxu0 0.0
  %680 = vmatpush1.msra.mxu0 %v638
  %681 = vmatprep.subr.mxu0 0.0
  %682 = vmatpush1.msra.mxu0 %v639
  %683 = vmatprep.subr.mxu0 0.0
  %684 = vmatpush1.msra.mxu0 %v640
  %685 = vmatprep.subr.mxu0 0.0
  %686 = vmatpush1.msra.mxu0 %v641
  %687 = vmatprep.subr.mxu0 0.0
  %688 = vmatpush1.msra.mxu0 %v642
  %689 = vmatprep.subr.mxu0 0.0
  %690 = vmatpush1.msra.mxu0 %v643
  %691 = vmatprep.subr.mxu0 0.0
  %692 = vmatpush1.msra.mxu0 %v644
  %693 = vmatprep.subr.mxu0 0.0
  %694 = vmatpush1.msra.mxu0 %v645
  %695 = vmatprep.subr.mxu0 0.0
  %696 = vmatpush1.msra.mxu0 %v646
  %697 = vmatprep.subr.mxu0 0.0
  %698 = vmatpush1.msra.mxu0 %v647
  %699 = vmatprep.subr.mxu0 0.0
  %700 = vmatpush1.msra.mxu0 %v648
  %701 = vmatprep.subr.mxu0 0.0
  %702 = vmatpush1.msra.mxu0 %v649
  %703 = vmatprep.subr.mxu0 0.0
  %704 = vmatpush1.msra.mxu0 %v650
  %705 = vmatprep.subr.mxu0 0.0
  %706 = vmatpush1.msra.mxu0 %v651
  %707 = vmatprep.subr.mxu0 0.0
  %708 = vmatpush1.msra.mxu0 %v652
  %709 = vmatprep.subr.mxu0 0.0
  %710 = vmatpush1.msra.mxu0 %v653
  %711 = vmatprep.subr.mxu0 0.0
  %712 = vmatpush1.msra.mxu0 %v654
  %713 = vmatprep.subr.mxu0 0.0
  %714 = vmatpush1.msra.mxu0 %v655
  %715 = vmatprep.subr.mxu0 0.0
  %716 = vmatpush1.msra.mxu0 %v656
  %717 = vmatprep.subr.mxu0 0.0
  %718 = vmatpush1.msra.mxu0 %v657
  %719 = vmatprep.subr.mxu0 0.0
  %720 = vmatpush1.msra.mxu0 %v658
  %721 = vmatprep.subr.mxu0 0.0
  %722 = vmatpush1.msra.mxu0 %v659
  %723 = vmatprep.subr.mxu0 0.0
  %724 = vmatpush1.msra.mxu0 %v660
  %725 = vmatprep.mubr.f32.mxu0 %v495
  %726 = vmatmul.mubr.f32.gmra.mrb[0].mxu0 %v493
  %v727 = vpop.f32.mrb[0].mxu0
  %v728 = vadd.f32 0.0, %v727
  %v729 = vpop.f32.mrb[0].mxu0
  %730 = vmatprep.mubr.f32.mxu0 %v499
  %731 = vmatmul.mubr.f32.gmra.mrb[0].mxu0 %v497
  %v732 = vpop.f32.mrb[0].mxu0
  %v733 = vadd.f32 0.0, %v732
  %v734 = vpop.f32.mrb[0].mxu0
  %735 = vmatprep.mubr.f32.mxu0 %v503
  %736 = vmatmul.mubr.f32.gmra.mrb[0].mxu0 %v501
  %v737 = vpop.f32.mrb[0].mxu0
  %v738 = vadd.f32 0.0, %v737
  %v739 = vpop.f32.mrb[0].mxu0
  %740 = vmatprep.mubr.f32.mxu0 %v507
  %741 = vmatmul.mubr.f32.gmra.mrb[0].mxu0 %v505
  %v742 = vpop.f32.mrb[0].mxu0
  %v743 = vadd.f32 0.0, %v742
  %v744 = vpop.f32.mrb[0].mxu0
  %745 = vdwg.mxu0
  %v746 = vmul.f32 %v728, %v625
  %v747 = vmul.f32 %v733, %v626
  %v748 = vmul.f32 %v738, %v627
  %v749 = vmul.f32 %v743, %v628
  %v750 = vld [vmem:[%s6] sm:$0x1]
  %v752 = vlaneseq
  %v753 = vshrl.u32 %v752, 7
  %v754 = vsub.s32 0, %v753
  %v755 = vrot.slane %v750, %v754
  %v757 = vadd.f32 %v746, %v755
  %v758 = vadd.f32 %v747, %v755
  %v759 = vadd.f32 %v748, %v755
  %v760 = vadd.f32 %v749, %v755
  %vm761 = vcmp.gt.f32.partialorder %v757, 0.0
  %vm762 = vcmp.gt.f32.partialorder %v758, 0.0
  %vm763 = vcmp.gt.f32.partialorder %v759, 0.0
  %vm764 = vcmp.gt.f32.partialorder %v760, 0.0
  %v765 = vmin.f32 %v757, 0.0
  %v766 = vmin.f32 %v758, 0.0
  %v767 = vmin.f32 %v759, 0.0
  %v768 = vmin.f32 %v760, 0.0
  %v769 = vmul.f32 %v765, 1.442695
  %v770 = vpow.pop %v769
  %v771 = vmul.f32 %v766, 1.442695
  %v772 = vpow.pop %v771
  %v773 = vmul.f32 %v767, 1.442695
  %v774 = vpow.pop %v773
  %v775 = vmul.f32 %v768, 1.442695
  %v776 = vpow.pop %v775
  %v777 = vsub.f32 %v770, 1.0
  %v778 = vsub.f32 %v772, 1.0
  %v779 = vsub.f32 %v774, 1.0
  %v780 = vsub.f32 %v776, 1.0
  %v781 = vsel %vm761, %v757, %v777
  %v782 = vsel %vm762, %v758, %v778
  %v783 = vsel %vm763, %v759, %v779
  %v784 = vsel %vm764, %v760, %v780
  %v785 = vld [vmem:[%s7] sm:$0xff]
  %v786 = vld [vmem:[%s7 + $0x8] sm:$0xff]
  %v787 = vld [vmem:[%s7 + $0x10] sm:$0xff]
  %v788 = vld [vmem:[%s7 + $0x18] sm:$0xff]
  %v789 = vld [vmem:[%s7 + $0x20] sm:$0xff]
  %v790 = vld [vmem:[%s7 + $0x28] sm:$0xff]
  %v791 = vld [vmem:[%s7 + $0x30] sm:$0xff]
  %v792 = vld [vmem:[%s7 + $0x38] sm:$0xff]
  %v794 = vsel %vm147, %v781, 0
  %v797 = vsel %vm147, %v782, 0
  %v800 = vsel %vm147, %v783, 0
  %v803 = vsel %vm147, %v784, 0
  %805 = vmatprep.subr.mxu0 0.0
  %806 = vmatpush1.msra.mxu0 %v785
  %807 = vmatprep.subr.mxu0 0.0
  %808 = vmatpush1.msra.mxu0 %v786
  %809 = vmatprep.subr.mxu0 0.0
  %810 = vmatpush1.msra.mxu0 %v787
  %811 = vmatprep.subr.mxu0 0.0
  %812 = vmatpush1.msra.mxu0 %v788
  %813 = vmatprep.subr.mxu0 0.0
  %814 = vmatpush1.msra.mxu0 %v789
  %815 = vmatprep.subr.mxu0 0.0
  %816 = vmatpush1.msra.mxu0 %v790
  %817 = vmatprep.subr.mxu0 0.0
  %818 = vmatpush1.msra.mxu0 %v791
  %819 = vmatprep.subr.mxu0 0.0
  %820 = vmatpush1.msra.mxu0 %v792
  %821 = vmatprep.subr.mxu0 0.0
  %822 = vmatpush1.msra.mxu0 0.0
  %823 = vmatprep.subr.mxu0 0.0
  %824 = vmatpush1.msra.mxu0 0.0
  %825 = vmatprep.subr.mxu0 0.0
  %826 = vmatpush1.msra.mxu0 0.0
  %827 = vmatprep.subr.mxu0 0.0
  %828 = vmatpush1.msra.mxu0 0.0
  %829 = vmatprep.subr.mxu0 0.0
  %830 = vmatpush1.msra.mxu0 0.0
  %831 = vmatprep.subr.mxu0 0.0
  %832 = vmatpush1.msra.mxu0 0.0
  %833 = vmatprep.subr.mxu0 0.0
  %834 = vmatpush1.msra.mxu0 0.0
  %835 = vmatprep.subr.mxu0 0.0
  %836 = vmatpush1.msra.mxu0 0.0
  %837 = vmatprep.subr.mxu0 0.0
  %838 = vmatpush1.msra.mxu0 0.0
  %839 = vmatprep.subr.mxu0 0.0
  %840 = vmatpush1.msra.mxu0 0.0
  %841 = vmatprep.subr.mxu0 0.0
  %842 = vmatpush1.msra.mxu0 0.0
  %843 = vmatprep.subr.mxu0 0.0
  %844 = vmatpush1.msra.mxu0 0.0
  %845 = vmatprep.subr.mxu0 0.0
  %846 = vmatpush1.msra.mxu0 0.0
  %847 = vmatprep.subr.mxu0 0.0
  %848 = vmatpush1.msra.mxu0 0.0
  %849 = vmatprep.subr.mxu0 0.0
  %850 = vmatpush1.msra.mxu0 0.0
  %851 = vmatprep.subr.mxu0 0.0
  %852 = vmatpush1.msra.mxu0 0.0
  %853 = vmatprep.subr.mxu0 0.0
  %854 = vmatpush1.msra.mxu0 0.0
  %855 = vmatprep.subr.mxu0 0.0
  %856 = vmatpush1.msra.mxu0 0.0
  %857 = vmatprep.subr.mxu0 0.0
  %858 = vmatpush1.msra.mxu0 0.0
  %859 = vmatprep.subr.mxu0 0.0
  %860 = vmatpush1.msra.mxu0 0.0
  %861 = vmatprep.subr.mxu0 0.0
  %862 = vmatpush1.msra.mxu0 0.0
  %863 = vmatprep.subr.mxu0 0.0
  %864 = vmatpush1.msra.mxu0 0.0
  %865 = vmatprep.subr.mxu0 0.0
  %866 = vmatpush1.msra.mxu0 0.0
  %867 = vmatprep.subr.mxu0 0.0
  %868 = vmatpush1.msra.mxu0 0.0
  %869 = vmatprep.mubr.f32.mxu0 0.0
  %870 = vmatmul.mubr.f32.gmra.mrb[0].mxu0 %v794
  %v871 = vpop.f32.mrb[0].mxu0
  %v872 = vadd.f32 0.0, %v871
  %v873 = vpop.f32.mrb[0].mxu0
  %874 = vmatprep.mubr.f32.mxu0 0.0
  %875 = vmatmul.mubr.f32.gmra.mrb[0].mxu0 %v797
  %v876 = vpop.f32.mrb[0].mxu0
  %v877 = vadd.f32 0.0, %v876
  %v878 = vpop.f32.mrb[0].mxu0
  %879 = vmatprep.mubr.f32.mxu0 0.0
  %880 = vmatmul.mubr.f32.gmra.mrb[0].mxu0 %v800
  %v881 = vpop.f32.mrb[0].mxu0
  %v882 = vadd.f32 0.0, %v881
  %v883 = vpop.f32.mrb[0].mxu0
  %884 = vmatprep.mubr.f32.mxu0 0.0
  %885 = vmatmul.mubr.f32.gmra.mrb[0].mxu0 %v803
  %v886 = vpop.f32.mrb[0].mxu0
  %v887 = vadd.f32 0.0, %v886
  %v888 = vpop.f32.mrb[0].mxu0
  %889 = vdwg.mxu0
  %v890 = vld [vmem:[%s8] sm:$0x7f]
  %vm891 = vcmask 56320
  %v893 = vsel %vm891, %v872, 0
  %v896 = vsel %vm891, %v877, 0
  %v899 = vsel %vm891, %v882, 0
  %v902 = vsel %vm891, %v887, 0
  %vm904 = vcmask 1046528
  %v906 = vsel %vm904, %v890, 0
  %908 = vmatprep.subr.mxu0 0.0
  %909 = vmatpush1.msra.mxu0 %v906
  %910 = vmatprep.subr.mxu0 0.0
  %911 = vmatpush1.msra.mxu0 0.0
  %912 = vmatprep.subr.mxu0 0.0
  %913 = vmatpush1.msra.mxu0 0.0
  %914 = vmatprep.subr.mxu0 0.0
  %915 = vmatpush1.msra.mxu0 0.0
  %916 = vmatprep.subr.mxu0 0.0
  %917 = vmatpush1.msra.mxu0 0.0
  %918 = vmatprep.subr.mxu0 0.0
  %919 = vmatpush1.msra.mxu0 0.0
  %920 = vmatprep.subr.mxu0 0.0
  %921 = vmatpush1.msra.mxu0 0.0
  %922 = vmatprep.subr.mxu0 0.0
  %923 = vmatpush1.msra.mxu0 0.0
  %924 = vmatprep.subr.mxu0 0.0
  %925 = vmatpush1.msra.mxu0 0.0
  %926 = vmatprep.subr.mxu0 0.0
  %927 = vmatpush1.msra.mxu0 0.0
  %928 = vmatprep.subr.mxu0 0.0
  %929 = vmatpush1.msra.mxu0 0.0
  %930 = vmatprep.subr.mxu0 0.0
  %931 = vmatpush1.msra.mxu0 0.0
  %932 = vmatprep.subr.mxu0 0.0
  %933 = vmatpush1.msra.mxu0 0.0
  %934 = vmatprep.subr.mxu0 0.0
  %935 = vmatpush1.msra.mxu0 0.0
  %936 = vmatprep.subr.mxu0 0.0
  %937 = vmatpush1.msra.mxu0 0.0
  %938 = vmatprep.subr.mxu0 0.0
  %939 = vmatpush1.msra.mxu0 0.0
  %940 = vmatprep.subr.mxu0 0.0
  %941 = vmatpush1.msra.mxu0 0.0
  %942 = vmatprep.subr.mxu0 0.0
  %943 = vmatpush1.msra.mxu0 0.0
  %944 = vmatprep.subr.mxu0 0.0
  %945 = vmatpush1.msra.mxu0 0.0
  %946 = vmatprep.subr.mxu0 0.0
  %947 = vmatpush1.msra.mxu0 0.0
  %948 = vmatprep.subr.mxu0 0.0
  %949 = vmatpush1.msra.mxu0 0.0
  %950 = vmatprep.subr.mxu0 0.0
  %951 = vmatpush1.msra.mxu0 0.0
  %952 = vmatprep.subr.mxu0 0.0
  %953 = vmatpush1.msra.mxu0 0.0
  %954 = vmatprep.subr.mxu0 0.0
  %955 = vmatpush1.msra.mxu0 0.0
  %956 = vmatprep.subr.mxu0 0.0
  %957 = vmatpush1.msra.mxu0 0.0
  %958 = vmatprep.subr.mxu0 0.0
  %959 = vmatpush1.msra.mxu0 0.0
  %960 = vmatprep.subr.mxu0 0.0
  %961 = vmatpush1.msra.mxu0 0.0
  %962 = vmatprep.subr.mxu0 0.0
  %963 = vmatpush1.msra.mxu0 0.0
  %964 = vmatprep.subr.mxu0 0.0
  %965 = vmatpush1.msra.mxu0 0.0
  %966 = vmatprep.subr.mxu0 0.0
  %967 = vmatpush1.msra.mxu0 0.0
  %968 = vmatprep.subr.mxu0 0.0
  %969 = vmatpush1.msra.mxu0 0.0
  %970 = vmatprep.subr.mxu0 0.0
  %971 = vmatpush1.msra.mxu0 0.0
  %972 = vmatprep.mubr.f32.mxu0 0.0
  %973 = vmatmul.mubr.f32.gmra.mrb[0].mxu0 %v893
  %v974 = vpop.f32.mrb[0].mxu0
  %v975 = vadd.f32 0.0, %v974
  %v976 = vpop.f32.mrb[0].mxu0
  %977 = vmatprep.mubr.f32.mxu0 0.0
  %978 = vmatmul.mubr.f32.gmra.mrb[0].mxu0 %v896
  %v979 = vpop.f32.mrb[0].mxu0
  %v980 = vadd.f32 0.0, %v979
  %v981 = vpop.f32.mrb[0].mxu0
  %982 = vmatprep.mubr.f32.mxu0 0.0
  %983 = vmatmul.mubr.f32.gmra.mrb[0].mxu0 %v899
  %v984 = vpop.f32.mrb[0].mxu0
  %v985 = vadd.f32 0.0, %v984
  %v986 = vpop.f32.mrb[0].mxu0
  %987 = vmatprep.mubr.f32.mxu0 0.0
  %988 = vmatmul.mubr.f32.gmra.mrb[0].mxu0 %v902
  %v989 = vpop.f32.mrb[0].mxu0
  %v990 = vadd.f32 0.0, %v989
  %v991 = vpop.f32.mrb[0].mxu0
  %992 = vdwg.mxu0
  %993 = vxpose.xlu0.b32.start [1/16] %v975, 128
  %994 = vxpose.xlu0.b32.cont [2/16] %v980, 128
  %995 = vxpose.xlu0.b32.cont [3/16] %v985, 128
  %996 = vxpose.xlu0.b32.cont [4/16] %v990, 128
  %997 = vxpose.xlu0.b32.cont [5/16] 0.0, 128
  %998 = vxpose.xlu0.b32.cont [6/16] 0.0, 128
  %999 = vxpose.xlu0.b32.cont [7/16] 0.0, 128
  %1000 = vxpose.xlu0.b32.cont [8/16] 0.0, 128
  %1001 = vxpose.xlu0.b32.cont [9/16] 0.0, 128
  %1002 = vxpose.xlu0.b32.cont [10/16] 0.0, 128
  %1003 = vxpose.xlu0.b32.cont [11/16] 0.0, 128
  %1004 = vxpose.xlu0.b32.cont [12/16] 0.0, 128
  %1005 = vxpose.xlu0.b32.cont [13/16] 0.0, 128
  %1006 = vxpose.xlu0.b32.cont [14/16] 0.0, 128
  %1007 = vxpose.xlu0.b32.cont [15/16] 0.0, 128
  %1008 = vxpose.xlu0.b32.end [16/16] 0.0, 128
  %v1009 = vpop.trf.xlu0
  %v1010 = vpop.trf.xlu0
  %v1011 = vpop.trf.xlu0
  %v1012 = vpop.trf.xlu0
  %v1013 = vpop.trf.xlu0
  %v1014 = vpop.trf.xlu0
  %v1015 = vpop.trf.xlu0
  %v1016 = vpop.trf.xlu0
  %v1017 = vpop.trf.xlu0
  %v1018 = vpop.trf.xlu0
  %v1019 = vpop.trf.xlu0
  %v1020 = vpop.trf.xlu0
  %v1021 = vpop.trf.xlu0
  %v1022 = vpop.trf.xlu0
  %v1023 = vpop.trf.xlu0
  %v1024 = vpop.trf.xlu0
  %1026 = vset.pattern.permute.xlu0 1
  %1027 = vperm.xlu0 %1026, %v975
  %v1028 = vpop.permute.xlu0 %1027
  %1031 = vset.pattern.permute.xlu0 1
  %1032 = vperm.xlu0 %1031, %v980
  %v1033 = vpop.permute.xlu0 %1032
  %1036 = vset.pattern.permute.xlu0 1
  %1037 = vperm.xlu0 %1036, %v985
  %v1038 = vpop.permute.xlu0 %1037
  %1041 = vset.pattern.permute.xlu0 1
  %1042 = vperm.xlu0 %1041, %v990
  %v1043 = vpop.permute.xlu0 %1042
  %v1045 = vlaneseq
  %v1046 = vshrl.u32 %v1045, 7
  %v1047 = vsub.s32 0, %v1046
  %v1048 = vrot.slane %v1009, %v1047
  %v1049 = vadd.f32 %v1028, %v1048
  %v1050 = vadd.f32 %v1033, %v1048
  %v1051 = vadd.f32 %v1038, %v1048
  %v1052 = vadd.f32 %v1043, %v1048
  %vm1053 = vcmp.gt.f32.partialorder %v1049, 0.0
  %vm1054 = vcmp.gt.f32.partialorder %v1050, 0.0
  %vm1055 = vcmp.gt.f32.partialorder %v1051, 0.0
  %vm1056 = vcmp.gt.f32.partialorder %v1052, 0.0
  %v1057 = vmul.f32 %v1049, 0.2
  %v1058 = vmul.f32 %v1050, 0.2
  %v1059 = vmul.f32 %v1051, 0.2
  %v1060 = vmul.f32 %v1052, 0.2
  %v1061 = vsel %vm1053, %v1049, %v1057
  %v1062 = vsel %vm1054, %v1050, %v1058
  %v1063 = vsel %vm1055, %v1051, %v1059
  %v1064 = vsel %vm1056, %v1052, %v1060
  %v1065 = vld [vmem:[%s5] sm:$0xff]
  %v1066 = vld [vmem:[%s5 + $0x10] sm:$0xff]
  %v1067 = vld [vmem:[%s5 + $0x20] sm:$0xff]
  %v1068 = vld [vmem:[%s5 + $0x30] sm:$0xff]
  %v1069 = vadd.f32 %v1061, %v1065
  %v1070 = vadd.f32 %v1062, %v1066
  %v1071 = vadd.f32 %v1063, %v1067
  %v1072 = vadd.f32 %v1064, %v1068
  %v1073 = vsel %vm304, %v1069, -inf
  %1074 = vmax.xlane.f32.xlu0 %v1073
  %v1075 = vpop.xlane.xlu0 %1074
  %v1076 = vsel %vm304, %v1070, -inf
  %1077 = vmax.xlane.f32.xlu0 %v1076
  %v1078 = vpop.xlane.xlu0 %1077
  %v1079 = vsel %vm304, %v1071, -inf
  %1080 = vmax.xlane.f32.xlu0 %v1079
  %v1081 = vpop.xlane.xlu0 %1080
  %v1082 = vsel %vm304, %v1072, -inf
  %1083 = vmax.xlane.f32.xlu0 %v1082
  %v1084 = vpop.xlane.xlu0 %1083
  %v1085 = vsub.f32 %v1069, %v1075
  %v1086 = vsub.f32 %v1070, %v1078
  %v1087 = vsub.f32 %v1071, %v1081
  %v1088 = vsub.f32 %v1072, %v1084
  %v1089 = vmul.f32 %v1085, 1.442695
  %v1090 = vpow.pop %v1089
  %v1091 = vmul.f32 %v1086, 1.442695
  %v1092 = vpow.pop %v1091
  %v1093 = vmul.f32 %v1087, 1.442695
  %v1094 = vpow.pop %v1093
  %v1095 = vmul.f32 %v1088, 1.442695
  %v1096 = vpow.pop %v1095
  %v1097 = vsel %vm891, %v872, 1.0
  %v1098 = vsel %vm891, %v877, 1.0
  %v1099 = vsel %vm891, %v882, 1.0
  %v1100 = vsel %vm891, %v887, 1.0
  %v1102 = vsel %vm304, %v1090, 0
  %v1105 = vsel %vm304, %v1092, 0
  %v1108 = vsel %vm304, %v1094, 0
  %v1111 = vsel %vm304, %v1096, 0
  %1113 = vmatprep.subr.mxu0 0.0
  %1114 = vmatpush1.msra.mxu0 %v1097
  %1115 = vmatprep.subr.mxu0 0.0
  %1116 = vmatpush1.msra.mxu0 %v1098
  %1117 = vmatprep.subr.mxu0 0.0
  %1118 = vmatpush1.msra.mxu0 %v1099
  %1119 = vmatprep.subr.mxu0 0.0
  %1120 = vmatpush1.msra.mxu0 %v1100
  %1121 = vmatprep.subr.mxu0 0.0
  %1122 = vmatpush1.msra.mxu0 0.0
  %1123 = vmatprep.subr.mxu0 0.0
  %1124 = vmatpush1.msra.mxu0 0.0
  %1125 = vmatprep.subr.mxu0 0.0
  %1126 = vmatpush1.msra.mxu0 0.0
  %1127 = vmatprep.subr.mxu0 0.0
  %1128 = vmatpush1.msra.mxu0 0.0
  %1129 = vmatprep.subr.mxu0 0.0
  %1130 = vmatpush1.msra.mxu0 0.0
  %1131 = vmatprep.subr.mxu0 0.0
  %1132 = vmatpush1.msra.mxu0 0.0
  %1133 = vmatprep.subr.mxu0 0.0
  %1134 = vmatpush1.msra.mxu0 0.0
  %1135 = vmatprep.subr.mxu0 0.0
  %1136 = vmatpush1.msra.mxu0 0.0
  %1137 = vmatprep.subr.mxu0 0.0
  %1138 = vmatpush1.msra.mxu0 0.0
  %1139 = vmatprep.subr.mxu0 0.0
  %1140 = vmatpush1.msra.mxu0 0.0
  %1141 = vmatprep.subr.mxu0 0.0
  %1142 = vmatpush1.msra.mxu0 0.0
  %1143 = vmatprep.subr.mxu0 0.0
  %1144 = vmatpush1.msra.mxu0 0.0
  %1145 = vmatprep.subr.mxu0 0.0
  %1146 = vmatpush1.msra.mxu0 0.0
  %1147 = vmatprep.subr.mxu0 0.0
  %1148 = vmatpush1.msra.mxu0 0.0
  %1149 = vmatprep.subr.mxu0 0.0
  %1150 = vmatpush1.msra.mxu0 0.0
  %1151 = vmatprep.subr.mxu0 0.0
  %1152 = vmatpush1.msra.mxu0 0.0
  %1153 = vmatprep.subr.mxu0 0.0
  %1154 = vmatpush1.msra.mxu0 0.0
  %1155 = vmatprep.subr.mxu0 0.0
  %1156 = vmatpush1.msra.mxu0 0.0
  %1157 = vmatprep.subr.mxu0 0.0
  %1158 = vmatpush1.msra.mxu0 0.0
  %1159 = vmatprep.subr.mxu0 0.0
  %1160 = vmatpush1.msra.mxu0 0.0
  %1161 = vmatprep.subr.mxu0 0.0
  %1162 = vmatpush1.msra.mxu0 0.0
  %1163 = vmatprep.subr.mxu0 0.0
  %1164 = vmatpush1.msra.mxu0 0.0
  %1165 = vmatprep.subr.mxu0 0.0
  %1166 = vmatpush1.msra.mxu0 0.0
  %1167 = vmatprep.subr.mxu0 0.0
  %1168 = vmatpush1.msra.mxu0 0.0
  %1169 = vmatprep.subr.mxu0 0.0
  %1170 = vmatpush1.msra.mxu0 0.0
  %1171 = vmatprep.subr.mxu0 0.0
  %1172 = vmatpush1.msra.mxu0 0.0
  %1173 = vmatprep.subr.mxu0 0.0
  %1174 = vmatpush1.msra.mxu0 0.0
  %1175 = vmatprep.subr.mxu0 0.0
  %1176 = vmatpush1.msra.mxu0 0.0
  %1177 = vmatprep.mubr.f32.mxu0 0.0
  %1178 = vmatmul.mubr.f32.gmra.mrb[0].mxu0 %v1102
  %v1179 = vpop.f32.mrb[0].mxu0
  %v1180 = vadd.f32 0.0, %v1179
  %v1181 = vpop.f32.mrb[0].mxu0
  %1182 = vmatprep.mubr.f32.mxu0 0.0
  %1183 = vmatmul.mubr.f32.gmra.mrb[0].mxu0 %v1105
  %v1184 = vpop.f32.mrb[0].mxu0
  %v1185 = vadd.f32 0.0, %v1184
  %v1186 = vpop.f32.mrb[0].mxu0
  %1187 = vmatprep.mubr.f32.mxu0 0.0
  %1188 = vmatmul.mubr.f32.gmra.mrb[0].mxu0 %v1108
  %v1189 = vpop.f32.mrb[0].mxu0
  %v1190 = vadd.f32 0.0, %v1189
  %v1191 = vpop.f32.mrb[0].mxu0
  %1192 = vmatprep.mubr.f32.mxu0 0.0
  %1193 = vmatmul.mubr.f32.gmra.mrb[0].mxu0 %v1111
  %v1194 = vpop.f32.mrb[0].mxu0
  %v1195 = vadd.f32 0.0, %v1194
  %v1196 = vpop.f32.mrb[0].mxu0
  %1197 = vdwg.mxu0
  %v1198 = vrcp.pop %v1180
  %v1199 = vrcp.pop %v1185
  %v1200 = vrcp.pop %v1190
  %v1201 = vrcp.pop %v1195
  %1203 = vset.pattern.permute.xlu0 7
  %1204 = vperm.xlu0 %1203, %v1198
  %v1205 = vpop.permute.xlu0 %1204
  %1208 = vset.pattern.permute.xlu0 7
  %1209 = vperm.xlu0 %1208, %v1199
  %v1210 = vpop.permute.xlu0 %1209
  %1213 = vset.pattern.permute.xlu0 7
  %1214 = vperm.xlu0 %1213, %v1200
  %v1215 = vpop.permute.xlu0 %1214
  %1218 = vset.pattern.permute.xlu0 7
  %1219 = vperm.xlu0 %1218, %v1201
  %v1220 = vpop.permute.xlu0 %1219
  %v1222 = vmul.f32 %v1180, %v1205
  %v1223 = vmul.f32 %v1185, %v1210
  %v1224 = vmul.f32 %v1190, %v1215
  %v1225 = vmul.f32 %v1195, %v1220
  %v1226 = vld [vmem:[%s9] sm:$0x1]
  %v1228 = vlaneseq
  %v1229 = vshrl.u32 %v1228, 7
  %v1230 = vsub.s32 0, %v1229
  %v1231 = vrot.slane %v1226, %v1230
  %v1233 = vadd.f32 %v1222, %v1231
  %v1234 = vadd.f32 %v1223, %v1231
  %v1235 = vadd.f32 %v1224, %v1231
  %v1236 = vadd.f32 %v1225, %v1231
  %v1237 = vsel %vm891, %v1233, -inf
  %1238 = vmax.xlane.f32.xlu0 %v1237
  %v1239 = vpop.xlane.xlu0 %1238
  %v1240 = vsel %vm891, %v1234, -inf
  %1241 = vmax.xlane.f32.xlu0 %v1240
  %v1242 = vpop.xlane.xlu0 %1241
  %v1243 = vsel %vm891, %v1235, -inf
  %1244 = vmax.xlane.f32.xlu0 %v1243
  %v1245 = vpop.xlane.xlu0 %1244
  %v1246 = vsel %vm891, %v1236, -inf
  %1247 = vmax.xlane.f32.xlu0 %v1246
  %v1248 = vpop.xlane.xlu0 %1247
  %v1249 = vsub.f32 %v1233, %v1239
  %v1250 = vsub.f32 %v1234, %v1242
  %v1251 = vsub.f32 %v1235, %v1245
  %v1252 = vsub.f32 %v1236, %v1248
  %v1253 = vmul.f32 %v1249, 1.442695
  %v1254 = vpow.pop %v1253
  %v1255 = vmul.f32 %v1250, 1.442695
  %v1256 = vpow.pop %v1255
  %v1257 = vmul.f32 %v1251, 1.442695
  %v1258 = vpow.pop %v1257
  %v1259 = vmul.f32 %v1252, 1.442695
  %v1260 = vpow.pop %v1259
  %v1261 = vsel %vm891, %v1254, 0.0
  %1262 = vadd.xlane.f32.xlu0 %v1261
  %v1263 = vpop.xlane.xlu0 %1262
  %v1264 = vsel %vm891, %v1256, 0.0
  %1265 = vadd.xlane.f32.xlu0 %v1264
  %v1266 = vpop.xlane.xlu0 %1265
  %v1267 = vsel %vm891, %v1258, 0.0
  %1268 = vadd.xlane.f32.xlu0 %v1267
  %v1269 = vpop.xlane.xlu0 %1268
  %v1270 = vsel %vm891, %v1260, 0.0
  %1271 = vadd.xlane.f32.xlu0 %v1270
  %v1272 = vpop.xlane.xlu0 %1271
  %v1273 = vlog2.pop %v1263
  %v1274 = vmul.f32 %v1273, 0.6931472
  %v1275 = vlog2.pop %v1266
  %v1276 = vmul.f32 %v1275, 0.6931472
  %v1277 = vlog2.pop %v1269
  %v1278 = vmul.f32 %v1277, 0.6931472
  %v1279 = vlog2.pop %v1272
  %v1280 = vmul.f32 %v1279, 0.6931472
  %v1281 = vsub.f32 %v1249, %v1274
  %v1282 = vsub.f32 %v1250, %v1276
  %v1283 = vsub.f32 %v1251, %v1278
  %v1284 = vsub.f32 %v1252, %v1280
  %1285 = vst.msk [vmem:[%s10] sm:$0xff] %vm891, %v1281
  %1286 = vst.msk [vmem:[%s10 + $0x8] sm:$0xff] %vm891, %v1282
  %1287 = vst.msk [vmem:[%s10 + $0x10] sm:$0xff] %vm891, %v1283
  %1288 = vst.msk [vmem:[%s10 + $0x18] sm:$0xff] %vm891, %v1284
  // Predicated region
  $region42: #{tpu_custom_call.1} parent=0 // pred_check
    _
  $region43: #{tpu_custom_call.1} parent=0 // pred_check_branch
    %1290 = sbr.rel (0) target = $region45
  $region44: #{tpu_custom_call.1} parent=0 // pred_region
    _
  $region45: #{tpu_custom_call.1} parent=0 // pred_fallthru
    _
  // Predicated region
  $region46: #{tpu_custom_call.1} parent=0 // pred_check
    _
  $region47: #{tpu_custom_call.1} parent=0 // pred_check_branch
    %1292 = sbr.rel (0) target = $region49
  $region48: #{tpu_custom_call.1} parent=0 // pred_region
    _
  $region49: #{tpu_custom_call.1} parent=0 // pred_fallthru
    _

</llo_original>
